<compile_context>
chip_gen: v7x
topology: tpu7x:2x2x1
jax: 0.10.0
libtpu: 0.0.40
codegen_flags: <defaults>
</compile_context>

<pallas_src>
import functools

import jax
import jax.numpy as jnp
from jax import lax
from jax.experimental import pallas as pl
from jax.experimental.pallas import tpu as pltpu


def _round_up(x, m):
    return (x + m - 1) // m * m


def _num_tensorcores():
    """2 on v7x (2 TensorCores per chip), else 1. Best-effort; defaults to 1."""
    try:
        kind = jax.devices()[0].device_kind.lower()
    except Exception:
        return 1
    return 2 if ("v7" in kind or "7x" in kind) else 1


def cbow_kernel(idx_ref, t_ref, b1_ref, w2_ref, b2_ref, o_ref, *, context_size, v_pad):
    """One batch tile: fused (gather + linear_1) matmul, ReLU, linear_2, log_softmax."""
    tm = o_ref.shape[0]

    idx = idx_ref[...]                                               # (tm, C) int32

    # One-hot over the fused (context, vocab) axis from a single iota: column
    # k = c * v_pad + j corresponds to (context c, vocab j); row r selects the
    # columns c * v_pad + idx[r, c] for every context c.
    col = lax.broadcasted_iota(jnp.int32, (tm, context_size * v_pad), 1)
    mask = col == idx[:, 0:1]
    for c in range(1, context_size):                                 # tiny static loop of ORs
        mask = jnp.logical_or(mask, col == idx[:, c:c + 1] + c * v_pad)
    onehot = mask.astype(jnp.bfloat16)                               # exact 0/1 in bf16

    # Fused embedding-gather + linear_1: single full-width MXU matmul (K = C*v_pad).
    h = jnp.dot(onehot, t_ref[...], preferred_element_type=jnp.float32)
    h = jnp.maximum(h + b1_ref[...], 0.0)                            # bias + ReLU in f32

    # linear_2 (bf16 MXU operands, f32 accumulate) + bias. Padded vocab columns carry
    # a -1e30 bias so they never win the max and exp() underflows to 0.
    logits = jnp.dot(h.astype(jnp.bfloat16), w2_ref[...],
                     preferred_element_type=jnp.float32) + b2_ref[...]   # (tm, v_pad)

    # Numerically stable log_softmax over the (padded) vocab axis.
    m = jnp.max(logits, axis=-1, keepdims=True)
    shifted = logits - m
    lse = jnp.log(jnp.sum(jnp.exp(shifted), axis=-1, keepdims=True))
    o_ref[...] = shifted - lse


def make_cbow_forward(emb_table, w1, b1, w2, b2, *, max_block_m=1024):
    """Prepares (once) the padded / fused bf16 weights and returns a jitted forward.

    Weight layout (JAX-side; Linear weights are transposed vs PyTorch's (out, in)):
      emb_table: (vocab_size, embedding_dim)
      w1: (context_size * embedding_dim, 128)   b1: (128,)
      w2: (128, vocab_size)                     b2: (vocab_size,)

    Returned forward:
      indices (context_size,)       -> (1, vocab_size)   [original nn.Module semantics]
      indices (batch, context_size) -> (batch, vocab_size)
    f32 log-probabilities.
    """
    emb_table = jnp.asarray(emb_table, jnp.float32)
    w1 = jnp.asarray(w1, jnp.float32)
    w2 = jnp.asarray(w2, jnp.float32)
    vocab_size, embedding_dim = emb_table.shape
    d_in, hidden = w1.shape
    assert d_in % embedding_dim == 0
    context_size = d_in // embedding_dim
    assert w2.shape == (hidden, vocab_size)

    v_pad = _round_up(vocab_size, 128)          # lane-dense logits / W2 / b2 / output
    n_tc = _num_tensorcores()

    # ---- one-time weight prep (hoisted out of the per-call path) ----
    # Fused gather+linear_1 table: T[c*v_pad + v, :] = emb[v, :] @ W1[c*D:(c+1)*D, :].
    emb_p = jnp.zeros((v_pad, embedding_dim), jnp.float32).at[:vocab_size].set(emb_table)
    w1_3 = w1.reshape(context_size, embedding_dim, hidden)
    fused_w1 = jnp.einsum("vd,cdh->cvh", emb_p, w1_3)
    fused_w1 = fused_w1.reshape(context_size * v_pad, hidden).astype(jnp.bfloat16)
    b1_f = jnp.asarray(b1, jnp.float32).reshape(1, hidden)
    w2_p = jnp.zeros((hidden, v_pad), jnp.bfloat16).at[:, :vocab_size].set(
        w2.astype(jnp.bfloat16))
    b2_p = jnp.full((1, v_pad), -1e30, jnp.float32).at[:, :vocab_size].set(
        jnp.asarray(b2, jnp.float32).reshape(1, vocab_size))

    kernel = functools.partial(cbow_kernel, context_size=context_size, v_pad=v_pad)

    def forward(indices):
        single = indices.ndim == 1
        idx = (indices[None, :] if single else indices).astype(jnp.int32)
        batch = idx.shape[0]

        # Batch tile: one grid step on 1-TC chips (v5e/v6e), one tile per core on v7x.
        tm = min(max_block_m, _round_up(pl.cdiv(max(batch, 8), n_tc), 8))
        n_tiles = pl.cdiv(batch, tm)
        b_pad = n_tiles * tm
        idx_p = jnp.zeros((b_pad, context_size), jnp.int32).at[:batch].set(idx)

        out = pl.pallas_call(
            kernel,
            out_shape=jax.ShapeDtypeStruct((b_pad, v_pad), jnp.float32),
            grid=(n_tiles,),
            in_specs=[
                pl.BlockSpec((tm, context_size), lambda i: (i, 0)),             # indices
                pl.BlockSpec((context_size * v_pad, hidden), lambda i: (0, 0)),  # fused emb@W1
                pl.BlockSpec((1, hidden), lambda i: (0, 0)),                    # b1
                pl.BlockSpec((hidden, v_pad), lambda i: (0, 0)),                # W2
                pl.BlockSpec((1, v_pad), lambda i: (0, 0)),                     # b2 (-1e30 pad)
            ],
            out_specs=pl.BlockSpec((tm, v_pad), lambda i: (i, 0)),
            compiler_params=pltpu.CompilerParams(
                dimension_semantics=("parallel",),    # 2 tiles -> both TCs on v7x
            ),
        )(idx_p, fused_w1, b1_f, w2_p, b2_p)

        return out[:batch, :vocab_size]

    return jax.jit(forward)


if __name__ == "__main__":
    vocab_size = 64
    embedding_dim = 16
    context_size = 4            # e.g. CONTEXT_SIZE = 2 words on each side
    hidden = 128
    batch = 256                 # many CBOW contexts per kernel call

    key = jax.random.PRNGKey(0)
    k_emb, k_w1, k_b1, k_w2, k_b2, k_idx = jax.random.split(key, 6)

    emb_table = jax.random.normal(k_emb, (vocab_size, embedding_dim), dtype=jnp.float32)
    w1 = jax.random.normal(k_w1, (context_size * embedding_dim, hidden), dtype=jnp.float32) * 0.05
    b1 = jax.random.normal(k_b1, (hidden,), dtype=jnp.float32) * 0.05
    w2 = jax.random.normal(k_w2, (hidden, vocab_size), dtype=jnp.float32) * 0.05
    b2 = jax.random.normal(k_b2, (vocab_size,), dtype=jnp.float32) * 0.05

    indices = jax.random.randint(k_idx, (batch, context_size), 0, vocab_size, dtype=jnp.int32)

    fwd = make_cbow_forward(emb_table, w1, b1, w2, b2)   # weight prep happens once here
    log_probs = jax.block_until_ready(fwd(indices))

    # Pure-JAX f32 reference (kernel stores fused emb@W1 and W2 in bf16 -> small tolerance).
    def ref_forward(idx2d):
        x = jnp.take(emb_table, idx2d, axis=0).reshape(idx2d.shape[0], -1)
        h = jnp.maximum(x @ w1 + b1[None, :], 0.0)
        logits = h @ w2 + b2[None, :]
        return jax.nn.log_softmax(logits, axis=-1)

    ref = ref_forward(indices)
    assert log_probs.shape == (batch, vocab_size)
    assert jnp.allclose(log_probs, ref, atol=2e-2, rtol=2e-2)
    # Each row must be a valid log-distribution.
    assert jnp.allclose(jax.scipy.special.logsumexp(log_probs, axis=-1), 0.0, atol=1e-4)

    # Single-context call — the exact nn.Module forward signature: (C,) -> (1, vocab).
    lp1 = jax.block_until_ready(fwd(indices[0]))
    assert lp1.shape == (1, vocab_size)
    assert jnp.allclose(lp1, ref[:1], atol=2e-2, rtol=2e-2)

    print("KERNEL_OK")
</pallas_src>

<mosaic_0001>
module attributes {stable_mosaic.version = 11 : i64} {
  func.func @cbow_kernel(%arg0: i32, %arg1: memref<256x4xi32, #tpu.memory_space<vmem>>, %arg2: memref<512x128xbf16, #tpu.memory_space<vmem>>, %arg3: memref<1x128xf32, #tpu.memory_space<vmem>>, %arg4: memref<128x128xbf16, #tpu.memory_space<vmem>>, %arg5: memref<1x128xf32, #tpu.memory_space<vmem>>, %arg6: memref<256x128xf32, #tpu.memory_space<vmem>>) attributes {dimension_semantics = [#tpu.dimension_semantics<parallel>], iteration_bounds = array<i64: 1>, scalar_prefetch = 0 : i64, scratch_operands = 0 : i64, tpu.core_type = #tpu.core_type<tc>, window_params = [{transform_indices = @transform_0, window_bounds = array<i64: 256, 4>}, {pipeline_mode = #tpu.pipeline_mode<synchronous>, transform_indices = @transform_1, window_bounds = array<i64: 512, 128>}, {pipeline_mode = #tpu.pipeline_mode<synchronous>, transform_indices = @transform_2, window_bounds = array<i64: 1, 128>}, {pipeline_mode = #tpu.pipeline_mode<synchronous>, transform_indices = @transform_3, window_bounds = array<i64: 128, 128>}, {pipeline_mode = #tpu.pipeline_mode<synchronous>, transform_indices = @transform_4, window_bounds = array<i64: 1, 128>}, {transform_indices = @transform_5, window_bounds = array<i64: 256, 128>}]} {
    %c0 = arith.constant 0 : index
    %c0_0 = arith.constant 0 : index
    %0 = vector.load %arg1[%c0, %c0_0] : memref<256x4xi32, #tpu.memory_space<vmem>>, vector<256x4xi32>
    %1 = tpu.iota {dimensions = array<i32: 1>} : vector<256x512xi32>
    %2 = vector.extract_strided_slice %0 {offsets = [0, 0], sizes = [256, 1], strides = [1, 1]} : vector<256x4xi32> to vector<256x1xi32>
    %3 = vector.broadcast %2 : vector<256x1xi32> to vector<256x512xi32>
    %4 = arith.cmpi eq, %1, %3 : vector<256x512xi32>
    %5 = vector.extract_strided_slice %0 {offsets = [0, 1], sizes = [256, 1], strides = [1, 1]} : vector<256x4xi32> to vector<256x1xi32>
    %c128_i32 = arith.constant 128 : i32
    %6 = vector.broadcast %c128_i32 : i32 to vector<256x1xi32>
    %7 = arith.addi %5, %6 : vector<256x1xi32>
    %8 = vector.broadcast %7 : vector<256x1xi32> to vector<256x512xi32>
    %9 = arith.cmpi eq, %1, %8 : vector<256x512xi32>
    %10 = arith.ori %4, %9 : vector<256x512xi1>
    %11 = vector.extract_strided_slice %0 {offsets = [0, 2], sizes = [256, 1], strides = [1, 1]} : vector<256x4xi32> to vector<256x1xi32>
    %c256_i32 = arith.constant 256 : i32
    %12 = vector.broadcast %c256_i32 : i32 to vector<256x1xi32>
    %13 = arith.addi %11, %12 : vector<256x1xi32>
    %14 = vector.broadcast %13 : vector<256x1xi32> to vector<256x512xi32>
    %15 = arith.cmpi eq, %1, %14 : vector<256x512xi32>
    %16 = arith.ori %10, %15 : vector<256x512xi1>
    %17 = vector.extract_strided_slice %0 {offsets = [0, 3], sizes = [256, 1], strides = [1, 1]} : vector<256x4xi32> to vector<256x1xi32>
    %c384_i32 = arith.constant 384 : i32
    %18 = vector.broadcast %c384_i32 : i32 to vector<256x1xi32>
    %19 = arith.addi %17, %18 : vector<256x1xi32>
    %20 = vector.broadcast %19 : vector<256x1xi32> to vector<256x512xi32>
    %21 = arith.cmpi eq, %1, %20 : vector<256x512xi32>
    %22 = arith.ori %16, %21 : vector<256x512xi1>
    %23 = arith.extui %22 : vector<256x512xi1> to vector<256x512xi32>
    %24 = arith.sitofp %23 : vector<256x512xi32> to vector<256x512xf32>
    %25 = arith.truncf %24 : vector<256x512xf32> to vector<256x512xbf16>
    %c0_1 = arith.constant 0 : index
    %c0_2 = arith.constant 0 : index
    %26 = vector.load %arg2[%c0_1, %c0_2] : memref<512x128xbf16, #tpu.memory_space<vmem>>, vector<512x128xbf16>
    %cst = arith.constant dense<0.000000e+00> : vector<256x128xf32>
    %27 = tpu.matmul %25, %26, %cst {dimension_numbers = #tpu.dot_dimension_numbers<[1], [0], [0], [1], [0, 0, 1, 1], [], []>} : vector<256x512xbf16>, vector<512x128xbf16>, vector<256x128xf32> -> vector<256x128xf32>
    %c0_3 = arith.constant 0 : index
    %c0_4 = arith.constant 0 : index
    %28 = vector.load %arg3[%c0_3, %c0_4] : memref<1x128xf32, #tpu.memory_space<vmem>>, vector<1x128xf32>
    %29 = vector.broadcast %28 : vector<1x128xf32> to vector<256x128xf32>
    %30 = arith.addf %27, %29 : vector<256x128xf32>
    %cst_5 = arith.constant 0.000000e+00 : f32
    %31 = vector.broadcast %cst_5 : f32 to vector<256x128xf32>
    %32 = arith.maximumf %30, %31 : vector<256x128xf32>
    %33 = arith.truncf %32 : vector<256x128xf32> to vector<256x128xbf16>
    %c0_6 = arith.constant 0 : index
    %c0_7 = arith.constant 0 : index
    %34 = vector.load %arg4[%c0_6, %c0_7] : memref<128x128xbf16, #tpu.memory_space<vmem>>, vector<128x128xbf16>
    %cst_8 = arith.constant dense<0.000000e+00> : vector<256x128xf32>
    %35 = tpu.matmul %33, %34, %cst_8 {dimension_numbers = #tpu.dot_dimension_numbers<[1], [0], [0], [1], [0, 0, 1, 1], [], []>} : vector<256x128xbf16>, vector<128x128xbf16>, vector<256x128xf32> -> vector<256x128xf32>
    %c0_9 = arith.constant 0 : index
    %c0_10 = arith.constant 0 : index
    %36 = vector.load %arg5[%c0_9, %c0_10] : memref<1x128xf32, #tpu.memory_space<vmem>>, vector<1x128xf32>
    %37 = vector.broadcast %36 : vector<1x128xf32> to vector<256x128xf32>
    %38 = arith.addf %35, %37 : vector<256x128xf32>
    %cst_11 = arith.constant dense<0xFF800000> : vector<256xf32>
    %39 = vector.multi_reduction <maximumf>, %38, %cst_11 [1] : vector<256x128xf32> to vector<256xf32>
    %40 = vector.shape_cast %39 : vector<256xf32> to vector<256x1xf32>
    %41 = vector.broadcast %40 : vector<256x1xf32> to vector<256x128xf32>
    %42 = arith.subf %38, %41 : vector<256x128xf32>
    %43 = math.exp %42 : vector<256x128xf32>
    %cst_12 = arith.constant dense<0.000000e+00> : vector<256xf32>
    %44 = vector.multi_reduction <add>, %43, %cst_12 [1] : vector<256x128xf32> to vector<256xf32>
    %45 = vector.shape_cast %44 : vector<256xf32> to vector<256x1xf32>
    %46 = math.log %45 : vector<256x1xf32>
    %47 = vector.broadcast %46 : vector<256x1xf32> to vector<256x128xf32>
    %48 = arith.subf %42, %47 : vector<256x128xf32>
    %c0_13 = arith.constant 0 : index
    %c0_14 = arith.constant 0 : index
    %49 = vector.load %arg6[%c0_13, %c0_14] : memref<256x128xf32, #tpu.memory_space<vmem>>, vector<256x128xf32>
    tpu.vector_store %arg6[%c0_13, %c0_14], %48 {strides = array<i32>} : memref<256x128xf32, #tpu.memory_space<vmem>>, vector<256x128xf32>,
    return
  }
  func.func @transform_0(%arg0: i32) -> (i32, i32) {
    %c0_i32 = arith.constant 0 : i32
    %c0_i32_0 = arith.constant 0 : i32
    return %arg0, %c0_i32 : i32, i32
  }
  func.func @transform_1(%arg0: i32) -> (i32, i32) {
    %c0_i32 = arith.constant 0 : i32
    %c0_i32_0 = arith.constant 0 : i32
    %c0_i32_1 = arith.constant 0 : i32
    return %c0_i32, %c0_i32_0 : i32, i32
  }
  func.func @transform_2(%arg0: i32) -> (i32, i32) {
    %c0_i32 = arith.constant 0 : i32
    %c0_i32_0 = arith.constant 0 : i32
    %c0_i32_1 = arith.constant 0 : i32
    return %c0_i32, %c0_i32_0 : i32, i32
  }
  func.func @transform_3(%arg0: i32) -> (i32, i32) {
    %c0_i32 = arith.constant 0 : i32
    %c0_i32_0 = arith.constant 0 : i32
    %c0_i32_1 = arith.constant 0 : i32
    return %c0_i32, %c0_i32_0 : i32, i32
  }
  func.func @transform_4(%arg0: i32) -> (i32, i32) {
    %c0_i32 = arith.constant 0 : i32
    %c0_i32_0 = arith.constant 0 : i32
    %c0_i32_1 = arith.constant 0 : i32
    return %c0_i32, %c0_i32_0 : i32, i32
  }
  func.func @transform_5(%arg0: i32) -> (i32, i32) {
    %c0_i32 = arith.constant 0 : i32
    %c0_i32_0 = arith.constant 0 : i32
    return %arg0, %c0_i32 : i32, i32
  }
}

</mosaic_0001>

<llo_original>
// kernel: forward.1
$region0: #{forward.1}
  #allocation0 [shape = 'u32[]', space=smem, size = 0x4, offset = 0x4, fixed_abs, tag = 'smem constant byte address 0x4 - core index']
  #allocation1 [shape = 'u32[144,128]{1,0:T(1,128)}', space=vmem, size = 0x12000, scoped, tag = 'internal scratch']
  %s0 = inlined_call_operand.vmem [shape: s32[256,4], index: 0, kind: input, shape index: {}]
  %s1 = inlined_call_operand.vmem [shape: bf16[512,128], index: 1, kind: input, shape index: {}]
  %s2 = inlined_call_operand.vmem [shape: f32[1,128], index: 2, kind: input, shape index: {}]
  %s3 = inlined_call_operand.hbm [shape: bf16[128,128], index: 3, kind: input, shape index: {}]
  %s4 = inlined_call_operand.vmem [shape: f32[1,128], index: 4, kind: input, shape index: {}]
  %s5 = inlined_call_operand.vmem [shape: f32[256,128], index: 5, kind: output, shape index: {}]
  %s6 = sld [smem:[#allocation0]]
  $region34: #{forward.1} parent=0
    _
  %s8 = ssub.s32 1, %s6
  %s9 = scalar_select 0, %s8, %s6
  $region1: #{forward.1} parent=0
    #allocation2 [shape = 'u8[32768]{0}', space=vmem, size = 0x8000, scoped, tag = 'input window, operand 3, single buffered']
    #allocation3 [shape = 's32[1]{0}', space=sflag, size = 0x4, scoped, tag = 'scoped memory for forward.1']
    %10 = vsyncpa [#allocation3], 0
    // Predicated region
    $region2: #{forward.1} parent=1 // pred_check
      _
    $region3: #{forward.1} parent=1 // pred_check_branch
      %12 = sbr.rel (0) target = $region5
    $region4: #{forward.1} parent=1 // pred_region
      _
    $region5: #{forward.1} parent=1 // pred_fallthru
      _
    // Predicated region
    $region6: #{forward.1} parent=1 // pred_check
      _
    $region7: #{forward.1} parent=1 // pred_check_branch
      %14 = sbr.rel (0) target = $region9
    $region8: #{forward.1} parent=1 // pred_region
      _
    $region9: #{forward.1} parent=1 // pred_fallthru
      _
    // Predicated region
    $region10: #{forward.1} parent=1 // pred_check
      _
    $region11: #{forward.1} parent=1 // pred_check_branch
      %16 = sbr.rel (0) target = $region13
    $region12: #{forward.1} parent=1 // pred_region
      _
    $region13: #{forward.1} parent=1 // pred_fallthru
      _
    // Predicated region
    $region14: #{forward.1} parent=1 // pred_check
      _
    $region15: #{forward.1} parent=1 // pred_check_branch
      %18 = sbr.rel (0) target = $region17
    $region16: #{forward.1} parent=1 // pred_region
      %s20 = ssub.s32 1024, 1024
      %21 = vsyncadd [#allocation3], %s20
      %s22 = sshll.u32 [#allocation2], 4
      %s23 = int_to_ptr.vmem [resolvable:$true] %s22
      %28 = dma.hbm_to_vmem [thread:$0]  %s3, 1024, %s23, [#allocation3], 64, 64, 4
    $region17: #{forward.1} parent=1 // pred_fallthru
      _
    // Predicated region
    $region18: #{forward.1} parent=1 // pred_check
      _
    $region19: #{forward.1} parent=1 // pred_check_branch
      %30 = sbr.rel (0) target = $region21
    $region20: #{forward.1} parent=1 // pred_region
      _
    $region21: #{forward.1} parent=1 // pred_fallthru
      _
    // Predicated region
    $region22: #{forward.1} parent=1 // pred_check
      _
    $region23: #{forward.1} parent=1 // pred_check_branch
      %32 = sbr.rel (0) target = $region25
    $region24: #{forward.1} parent=1 // pred_region
      %33 = dma.done [#allocation3], 1024
    $region25: #{forward.1} parent=1 // pred_fallthru
      _
    %v35 = vld [vmem:[%s0] sm:$0xff]
    %v36 = vld [vmem:[%s0 + $0x8] sm:$0xff]
    %v37 = vld [vmem:[%s0 + $0x10] sm:$0xff]
    %v38 = vld [vmem:[%s0 + $0x18] sm:$0xff]
    %v39 = vld [vmem:[%s0 + $0x20] sm:$0xff]
    %v40 = vld [vmem:[%s0 + $0x28] sm:$0xff]
    %v41 = vld [vmem:[%s0 + $0x30] sm:$0xff]
    %v42 = vld [vmem:[%s0 + $0x38] sm:$0xff]
    %v43 = vld [vmem:[%s0 + $0x40] sm:$0xff]
    %v44 = vld [vmem:[%s0 + $0x48] sm:$0xff]
    %v45 = vld [vmem:[%s0 + $0x50] sm:$0xff]
    %v46 = vld [vmem:[%s0 + $0x58] sm:$0xff]
    %v47 = vld [vmem:[%s0 + $0x60] sm:$0xff]
    %v48 = vld [vmem:[%s0 + $0x68] sm:$0xff]
    %v49 = vld [vmem:[%s0 + $0x70] sm:$0xff]
    %v50 = vld [vmem:[%s0 + $0x78] sm:$0xff]
    %v51 = vld [vmem:[%s0 + $0x80] sm:$0xff]
    %v52 = vld [vmem:[%s0 + $0x88] sm:$0xff]
    %v53 = vld [vmem:[%s0 + $0x90] sm:$0xff]
    %v54 = vld [vmem:[%s0 + $0x98] sm:$0xff]
    %v55 = vld [vmem:[%s0 + $0xa0] sm:$0xff]
    %v56 = vld [vmem:[%s0 + $0xa8] sm:$0xff]
    %v57 = vld [vmem:[%s0 + $0xb0] sm:$0xff]
    %v58 = vld [vmem:[%s0 + $0xb8] sm:$0xff]
    %v59 = vld [vmem:[%s0 + $0xc0] sm:$0xff]
    %v60 = vld [vmem:[%s0 + $0xc8] sm:$0xff]
    %v61 = vld [vmem:[%s0 + $0xd0] sm:$0xff]
    %v62 = vld [vmem:[%s0 + $0xd8] sm:$0xff]
    %v63 = vld [vmem:[%s0 + $0xe0] sm:$0xff]
    %v64 = vld [vmem:[%s0 + $0xe8] sm:$0xff]
    %v65 = vld [vmem:[%s0 + $0xf0] sm:$0xff]
    %v66 = vld [vmem:[%s0 + $0xf8] sm:$0xff]
    %v67 = vlaneseq
    %v68 = vand.u32 %v67, 127
    %v69 = vadd.s32 %v68, 128
    %v70 = vadd.s32 %v68, 256
    %v71 = vadd.s32 %v68, 384
    %72 = vset.pattern.permute.xlu0 0
    %73 = vperm.xlu0 %72, %v35
    %v74 = vpop.permute.xlu0 %73
    %75 = vset.pattern.permute.xlu0 0
    %76 = vperm.xlu0 %75, %v36
    %v77 = vpop.permute.xlu0 %76
    %78 = vset.pattern.permute.xlu0 0
    %79 = vperm.xlu0 %78, %v37
    %v80 = vpop.permute.xlu0 %79
    %81 = vset.pattern.permute.xlu0 0
    %82 = vperm.xlu0 %81, %v38
    %v83 = vpop.permute.xlu0 %82
    %84 = vset.pattern.permute.xlu0 0
    %85 = vperm.xlu0 %84, %v39
    %v86 = vpop.permute.xlu0 %85
    %87 = vset.pattern.permute.xlu0 0
    %88 = vperm.xlu0 %87, %v40
    %v89 = vpop.permute.xlu0 %88
    %90 = vset.pattern.permute.xlu0 0
    %91 = vperm.xlu0 %90, %v41
    %v92 = vpop.permute.xlu0 %91
    %93 = vset.pattern.permute.xlu0 0
    %94 = vperm.xlu0 %93, %v42
    %v95 = vpop.permute.xlu0 %94
    %96 = vset.pattern.permute.xlu0 0
    %97 = vperm.xlu0 %96, %v43
    %v98 = vpop.permute.xlu0 %97
    %99 = vset.pattern.permute.xlu0 0
    %100 = vperm.xlu0 %99, %v44
    %v101 = vpop.permute.xlu0 %100
    %102 = vset.pattern.permute.xlu0 0
    %103 = vperm.xlu0 %102, %v45
    %v104 = vpop.permute.xlu0 %103
    %105 = vset.pattern.permute.xlu0 0
    %106 = vperm.xlu0 %105, %v46
    %v107 = vpop.permute.xlu0 %106
    %108 = vset.pattern.permute.xlu0 0
    %109 = vperm.xlu0 %108, %v47
    %v110 = vpop.permute.xlu0 %109
    %111 = vset.pattern.permute.xlu0 0
    %112 = vperm.xlu0 %111, %v48
    %v113 = vpop.permute.xlu0 %112
    %114 = vset.pattern.permute.xlu0 0
    %115 = vperm.xlu0 %114, %v49
    %v116 = vpop.permute.xlu0 %115
    %117 = vset.pattern.permute.xlu0 0
    %118 = vperm.xlu0 %117, %v50
    %v119 = vpop.permute.xlu0 %118
    %120 = vset.pattern.permute.xlu0 0
    %121 = vperm.xlu0 %120, %v51
    %v122 = vpop.permute.xlu0 %121
    %123 = vset.pattern.permute.xlu0 0
    %124 = vperm.xlu0 %123, %v52
    %v125 = vpop.permute.xlu0 %124
    %126 = vset.pattern.permute.xlu0 0
    %127 = vperm.xlu0 %126, %v53
    %v128 = vpop.permute.xlu0 %127
    %129 = vset.pattern.permute.xlu0 0
    %130 = vperm.xlu0 %129, %v54
    %v131 = vpop.permute.xlu0 %130
    %132 = vset.pattern.permute.xlu0 0
    %133 = vperm.xlu0 %132, %v55
    %v134 = vpop.permute.xlu0 %133
    %135 = vset.pattern.permute.xlu0 0
    %136 = vperm.xlu0 %135, %v56
    %v137 = vpop.permute.xlu0 %136
    %138 = vset.pattern.permute.xlu0 0
    %139 = vperm.xlu0 %138, %v57
    %v140 = vpop.permute.xlu0 %139
    %141 = vset.pattern.permute.xlu0 0
    %142 = vperm.xlu0 %141, %v58
    %v143 = vpop.permute.xlu0 %142
    %144 = vset.pattern.permute.xlu0 0
    %145 = vperm.xlu0 %144, %v59
    %v146 = vpop.permute.xlu0 %145
    %147 = vset.pattern.permute.xlu0 0
    %148 = vperm.xlu0 %147, %v60
    %v149 = vpop.permute.xlu0 %148
    %150 = vset.pattern.permute.xlu0 0
    %151 = vperm.xlu0 %150, %v61
    %v152 = vpop.permute.xlu0 %151
    %153 = vset.pattern.permute.xlu0 0
    %154 = vperm.xlu0 %153, %v62
    %v155 = vpop.permute.xlu0 %154
    %156 = vset.pattern.permute.xlu0 0
    %157 = vperm.xlu0 %156, %v63
    %v158 = vpop.permute.xlu0 %157
    %159 = vset.pattern.permute.xlu0 0
    %160 = vperm.xlu0 %159, %v64
    %v161 = vpop.permute.xlu0 %160
    %162 = vset.pattern.permute.xlu0 0
    %163 = vperm.xlu0 %162, %v65
    %v164 = vpop.permute.xlu0 %163
    %165 = vset.pattern.permute.xlu0 0
    %166 = vperm.xlu0 %165, %v66
    %v167 = vpop.permute.xlu0 %166
    %vm168 = vcmp.eq.s32.totalorder %v68, %v74
    %vm169 = vcmp.eq.s32.totalorder %v69, %v74
    %vm170 = vcmp.eq.s32.totalorder %v70, %v74
    %vm171 = vcmp.eq.s32.totalorder %v71, %v74
    %vm172 = vcmp.eq.s32.totalorder %v68, %v77
    %vm173 = vcmp.eq.s32.totalorder %v69, %v77
    %vm174 = vcmp.eq.s32.totalorder %v70, %v77
    %vm175 = vcmp.eq.s32.totalorder %v71, %v77
    %vm176 = vcmp.eq.s32.totalorder %v68, %v80
    %vm177 = vcmp.eq.s32.totalorder %v69, %v80
    %vm178 = vcmp.eq.s32.totalorder %v70, %v80
    %vm179 = vcmp.eq.s32.totalorder %v71, %v80
    %vm180 = vcmp.eq.s32.totalorder %v68, %v83
    %vm181 = vcmp.eq.s32.totalorder %v69, %v83
    %vm182 = vcmp.eq.s32.totalorder %v70, %v83
    %vm183 = vcmp.eq.s32.totalorder %v71, %v83
    %vm184 = vcmp.eq.s32.totalorder %v68, %v86
    %vm185 = vcmp.eq.s32.totalorder %v69, %v86
    %vm186 = vcmp.eq.s32.totalorder %v70, %v86
    %vm187 = vcmp.eq.s32.totalorder %v71, %v86
    %vm188 = vcmp.eq.s32.totalorder %v68, %v89
    %vm189 = vcmp.eq.s32.totalorder %v69, %v89
    %vm190 = vcmp.eq.s32.totalorder %v70, %v89
    %vm191 = vcmp.eq.s32.totalorder %v71, %v89
    %vm192 = vcmp.eq.s32.totalorder %v68, %v92
    %vm193 = vcmp.eq.s32.totalorder %v69, %v92
    %vm194 = vcmp.eq.s32.totalorder %v70, %v92
    %vm195 = vcmp.eq.s32.totalorder %v71, %v92
    %vm196 = vcmp.eq.s32.totalorder %v68, %v95
    %vm197 = vcmp.eq.s32.totalorder %v69, %v95
    %vm198 = vcmp.eq.s32.totalorder %v70, %v95
    %vm199 = vcmp.eq.s32.totalorder %v71, %v95
    %vm200 = vcmp.eq.s32.totalorder %v68, %v98
    %vm201 = vcmp.eq.s32.totalorder %v69, %v98
    %vm202 = vcmp.eq.s32.totalorder %v70, %v98
    %vm203 = vcmp.eq.s32.totalorder %v71, %v98
    %vm204 = vcmp.eq.s32.totalorder %v68, %v101
    %vm205 = vcmp.eq.s32.totalorder %v69, %v101
    %vm206 = vcmp.eq.s32.totalorder %v70, %v101
    %vm207 = vcmp.eq.s32.totalorder %v71, %v101
    %vm208 = vcmp.eq.s32.totalorder %v68, %v104
    %vm209 = vcmp.eq.s32.totalorder %v69, %v104
    %vm210 = vcmp.eq.s32.totalorder %v70, %v104
    %vm211 = vcmp.eq.s32.totalorder %v71, %v104
    %vm212 = vcmp.eq.s32.totalorder %v68, %v107
    %vm213 = vcmp.eq.s32.totalorder %v69, %v107
    %vm214 = vcmp.eq.s32.totalorder %v70, %v107
    %vm215 = vcmp.eq.s32.totalorder %v71, %v107
    %vm216 = vcmp.eq.s32.totalorder %v68, %v110
    %vm217 = vcmp.eq.s32.totalorder %v69, %v110
    %vm218 = vcmp.eq.s32.totalorder %v70, %v110
    %vm219 = vcmp.eq.s32.totalorder %v71, %v110
    %vm220 = vcmp.eq.s32.totalorder %v68, %v113
    %vm221 = vcmp.eq.s32.totalorder %v69, %v113
    %vm222 = vcmp.eq.s32.totalorder %v70, %v113
    %vm223 = vcmp.eq.s32.totalorder %v71, %v113
    %vm224 = vcmp.eq.s32.totalorder %v68, %v116
    %vm225 = vcmp.eq.s32.totalorder %v69, %v116
    %vm226 = vcmp.eq.s32.totalorder %v70, %v116
    %vm227 = vcmp.eq.s32.totalorder %v71, %v116
    %vm228 = vcmp.eq.s32.totalorder %v68, %v119
    %vm229 = vcmp.eq.s32.totalorder %v69, %v119
    %vm230 = vcmp.eq.s32.totalorder %v70, %v119
    %vm231 = vcmp.eq.s32.totalorder %v71, %v119
    %vm232 = vcmp.eq.s32.totalorder %v68, %v122
    %vm233 = vcmp.eq.s32.totalorder %v69, %v122
    %vm234 = vcmp.eq.s32.totalorder %v70, %v122
    %vm235 = vcmp.eq.s32.totalorder %v71, %v122
    %vm236 = vcmp.eq.s32.totalorder %v68, %v125
    %vm237 = vcmp.eq.s32.totalorder %v69, %v125
    %vm238 = vcmp.eq.s32.totalorder %v70, %v125
    %vm239 = vcmp.eq.s32.totalorder %v71, %v125
    %vm240 = vcmp.eq.s32.totalorder %v68, %v128
    %vm241 = vcmp.eq.s32.totalorder %v69, %v128
    %vm242 = vcmp.eq.s32.totalorder %v70, %v128
    %vm243 = vcmp.eq.s32.totalorder %v71, %v128
    %vm244 = vcmp.eq.s32.totalorder %v68, %v131
    %vm245 = vcmp.eq.s32.totalorder %v69, %v131
    %vm246 = vcmp.eq.s32.totalorder %v70, %v131
    %vm247 = vcmp.eq.s32.totalorder %v71, %v131
    %vm248 = vcmp.eq.s32.totalorder %v68, %v134
    %vm249 = vcmp.eq.s32.totalorder %v69, %v134
    %vm250 = vcmp.eq.s32.totalorder %v70, %v134
    %vm251 = vcmp.eq.s32.totalorder %v71, %v134
    %vm252 = vcmp.eq.s32.totalorder %v68, %v137
    %vm253 = vcmp.eq.s32.totalorder %v69, %v137
    %vm254 = vcmp.eq.s32.totalorder %v70, %v137
    %vm255 = vcmp.eq.s32.totalorder %v71, %v137
    %vm256 = vcmp.eq.s32.totalorder %v68, %v140
    %vm257 = vcmp.eq.s32.totalorder %v69, %v140
    %vm258 = vcmp.eq.s32.totalorder %v70, %v140
    %vm259 = vcmp.eq.s32.totalorder %v71, %v140
    %vm260 = vcmp.eq.s32.totalorder %v68, %v143
    %vm261 = vcmp.eq.s32.totalorder %v69, %v143
    %vm262 = vcmp.eq.s32.totalorder %v70, %v143
    %vm263 = vcmp.eq.s32.totalorder %v71, %v143
    %vm264 = vcmp.eq.s32.totalorder %v68, %v146
    %vm265 = vcmp.eq.s32.totalorder %v69, %v146
    %vm266 = vcmp.eq.s32.totalorder %v70, %v146
    %vm267 = vcmp.eq.s32.totalorder %v71, %v146
    %vm268 = vcmp.eq.s32.totalorder %v68, %v149
    %vm269 = vcmp.eq.s32.totalorder %v69, %v149
    %vm270 = vcmp.eq.s32.totalorder %v70, %v149
    %vm271 = vcmp.eq.s32.totalorder %v71, %v149
    %vm272 = vcmp.eq.s32.totalorder %v68, %v152
    %vm273 = vcmp.eq.s32.totalorder %v69, %v152
    %vm274 = vcmp.eq.s32.totalorder %v70, %v152
    %vm275 = vcmp.eq.s32.totalorder %v71, %v152
    %vm276 = vcmp.eq.s32.totalorder %v68, %v155
    %vm277 = vcmp.eq.s32.totalorder %v69, %v155
    %vm278 = vcmp.eq.s32.totalorder %v70, %v155
    %vm279 = vcmp.eq.s32.totalorder %v71, %v155
    %vm280 = vcmp.eq.s32.totalorder %v68, %v158
    %vm281 = vcmp.eq.s32.totalorder %v69, %v158
    %vm282 = vcmp.eq.s32.totalorder %v70, %v158
    %vm283 = vcmp.eq.s32.totalorder %v71, %v158
    %vm284 = vcmp.eq.s32.totalorder %v68, %v161
    %vm285 = vcmp.eq.s32.totalorder %v69, %v161
    %vm286 = vcmp.eq.s32.totalorder %v70, %v161
    %vm287 = vcmp.eq.s32.totalorder %v71, %v161
    %vm288 = vcmp.eq.s32.totalorder %v68, %v164
    %vm289 = vcmp.eq.s32.totalorder %v69, %v164
    %vm290 = vcmp.eq.s32.totalorder %v70, %v164
    %vm291 = vcmp.eq.s32.totalorder %v71, %v164
    %vm292 = vcmp.eq.s32.totalorder %v68, %v167
    %vm293 = vcmp.eq.s32.totalorder %v69, %v167
    %vm294 = vcmp.eq.s32.totalorder %v70, %v167
    %vm295 = vcmp.eq.s32.totalorder %v71, %v167
    %v296 = vadd.s32 %v35, 128
    %v297 = vadd.s32 %v36, 128
    %v298 = vadd.s32 %v37, 128
    %v299 = vadd.s32 %v38, 128
    %v300 = vadd.s32 %v39, 128
    %v301 = vadd.s32 %v40, 128
    %v302 = vadd.s32 %v41, 128
    %v303 = vadd.s32 %v42, 128
    %v304 = vadd.s32 %v43, 128
    %v305 = vadd.s32 %v44, 128
    %v306 = vadd.s32 %v45, 128
    %v307 = vadd.s32 %v46, 128
    %v308 = vadd.s32 %v47, 128
    %v309 = vadd.s32 %v48, 128
    %v310 = vadd.s32 %v49, 128
    %v311 = vadd.s32 %v50, 128
    %v312 = vadd.s32 %v51, 128
    %v313 = vadd.s32 %v52, 128
    %v314 = vadd.s32 %v53, 128
    %v315 = vadd.s32 %v54, 128
    %v316 = vadd.s32 %v55, 128
    %v317 = vadd.s32 %v56, 128
    %v318 = vadd.s32 %v57, 128
    %v319 = vadd.s32 %v58, 128
    %v320 = vadd.s32 %v59, 128
    %v321 = vadd.s32 %v60, 128
    %v322 = vadd.s32 %v61, 128
    %v323 = vadd.s32 %v62, 128
    %v324 = vadd.s32 %v63, 128
    %v325 = vadd.s32 %v64, 128
    %v326 = vadd.s32 %v65, 128
    %v327 = vadd.s32 %v66, 128
    %328 = vset.pattern.permute.xlu0 1
    %329 = vperm.xlu0 %328, %v296
    %v330 = vpop.permute.xlu0 %329
    %331 = vset.pattern.permute.xlu0 1
    %332 = vperm.xlu0 %331, %v297
    %v333 = vpop.permute.xlu0 %332
    %334 = vset.pattern.permute.xlu0 1
    %335 = vperm.xlu0 %334, %v298
    %v336 = vpop.permute.xlu0 %335
    %337 = vset.pattern.permute.xlu0 1
    %338 = vperm.xlu0 %337, %v299
    %v339 = vpop.permute.xlu0 %338
    %340 = vset.pattern.permute.xlu0 1
    %341 = vperm.xlu0 %340, %v300
    %v342 = vpop.permute.xlu0 %341
    %343 = vset.pattern.permute.xlu0 1
    %344 = vperm.xlu0 %343, %v301
    %v345 = vpop.permute.xlu0 %344
    %346 = vset.pattern.permute.xlu0 1
    %347 = vperm.xlu0 %346, %v302
    %v348 = vpop.permute.xlu0 %347
    %349 = vset.pattern.permute.xlu0 1
    %350 = vperm.xlu0 %349, %v303
    %v351 = vpop.permute.xlu0 %350
    %352 = vset.pattern.permute.xlu0 1
    %353 = vperm.xlu0 %352, %v304
    %v354 = vpop.permute.xlu0 %353
    %355 = vset.pattern.permute.xlu0 1
    %356 = vperm.xlu0 %355, %v305
    %v357 = vpop.permute.xlu0 %356
    %358 = vset.pattern.permute.xlu0 1
    %359 = vperm.xlu0 %358, %v306
    %v360 = vpop.permute.xlu0 %359
    %361 = vset.pattern.permute.xlu0 1
    %362 = vperm.xlu0 %361, %v307
    %v363 = vpop.permute.xlu0 %362
    %364 = vset.pattern.permute.xlu0 1
    %365 = vperm.xlu0 %364, %v308
    %v366 = vpop.permute.xlu0 %365
    %367 = vset.pattern.permute.xlu0 1
    %368 = vperm.xlu0 %367, %v309
    %v369 = vpop.permute.xlu0 %368
    %370 = vset.pattern.permute.xlu0 1
    %371 = vperm.xlu0 %370, %v310
    %v372 = vpop.permute.xlu0 %371
    %373 = vset.pattern.permute.xlu0 1
    %374 = vperm.xlu0 %373, %v311
    %v375 = vpop.permute.xlu0 %374
    %376 = vset.pattern.permute.xlu0 1
    %377 = vperm.xlu0 %376, %v312
    %v378 = vpop.permute.xlu0 %377
    %379 = vset.pattern.permute.xlu0 1
    %380 = vperm.xlu0 %379, %v313
    %v381 = vpop.permute.xlu0 %380
    %382 = vset.pattern.permute.xlu0 1
    %383 = vperm.xlu0 %382, %v314
    %v384 = vpop.permute.xlu0 %383
    %385 = vset.pattern.permute.xlu0 1
    %386 = vperm.xlu0 %385, %v315
    %v387 = vpop.permute.xlu0 %386
    %388 = vset.pattern.permute.xlu0 1
    %389 = vperm.xlu0 %388, %v316
    %v390 = vpop.permute.xlu0 %389
    %391 = vset.pattern.permute.xlu0 1
    %392 = vperm.xlu0 %391, %v317
    %v393 = vpop.permute.xlu0 %392
    %394 = vset.pattern.permute.xlu0 1
    %395 = vperm.xlu0 %394, %v318
    %v396 = vpop.permute.xlu0 %395
    %397 = vset.pattern.permute.xlu0 1
    %398 = vperm.xlu0 %397, %v319
    %v399 = vpop.permute.xlu0 %398
    %400 = vset.pattern.permute.xlu0 1
    %401 = vperm.xlu0 %400, %v320
    %v402 = vpop.permute.xlu0 %401
    %403 = vset.pattern.permute.xlu0 1
    %404 = vperm.xlu0 %403, %v321
    %v405 = vpop.permute.xlu0 %404
    %406 = vset.pattern.permute.xlu0 1
    %407 = vperm.xlu0 %406, %v322
    %v408 = vpop.permute.xlu0 %407
    %409 = vset.pattern.permute.xlu0 1
    %410 = vperm.xlu0 %409, %v323
    %v411 = vpop.permute.xlu0 %410
    %412 = vset.pattern.permute.xlu0 1
    %413 = vperm.xlu0 %412, %v324
    %v414 = vpop.permute.xlu0 %413
    %415 = vset.pattern.permute.xlu0 1
    %416 = vperm.xlu0 %415, %v325
    %v417 = vpop.permute.xlu0 %416
    %418 = vset.pattern.permute.xlu0 1
    %419 = vperm.xlu0 %418, %v326
    %v420 = vpop.permute.xlu0 %419
    %421 = vset.pattern.permute.xlu0 1
    %422 = vperm.xlu0 %421, %v327
    %v423 = vpop.permute.xlu0 %422
    %vm424 = vcmp.eq.s32.totalorder %v68, %v330
    %vm425 = vcmp.eq.s32.totalorder %v69, %v330
    %vm426 = vcmp.eq.s32.totalorder %v70, %v330
    %vm427 = vcmp.eq.s32.totalorder %v71, %v330
    %vm428 = vcmp.eq.s32.totalorder %v68, %v333
    %vm429 = vcmp.eq.s32.totalorder %v69, %v333
    %vm430 = vcmp.eq.s32.totalorder %v70, %v333
    %vm431 = vcmp.eq.s32.totalorder %v71, %v333
    %vm432 = vcmp.eq.s32.totalorder %v68, %v336
    %vm433 = vcmp.eq.s32.totalorder %v69, %v336
    %vm434 = vcmp.eq.s32.totalorder %v70, %v336
    %vm435 = vcmp.eq.s32.totalorder %v71, %v336
    %vm436 = vcmp.eq.s32.totalorder %v68, %v339
    %vm437 = vcmp.eq.s32.totalorder %v69, %v339
    %vm438 = vcmp.eq.s32.totalorder %v70, %v339
    %vm439 = vcmp.eq.s32.totalorder %v71, %v339
    %vm440 = vcmp.eq.s32.totalorder %v68, %v342
    %vm441 = vcmp.eq.s32.totalorder %v69, %v342
    %vm442 = vcmp.eq.s32.totalorder %v70, %v342
    %vm443 = vcmp.eq.s32.totalorder %v71, %v342
    %vm444 = vcmp.eq.s32.totalorder %v68, %v345
    %vm445 = vcmp.eq.s32.totalorder %v69, %v345
    %vm446 = vcmp.eq.s32.totalorder %v70, %v345
    %vm447 = vcmp.eq.s32.totalorder %v71, %v345
    %vm448 = vcmp.eq.s32.totalorder %v68, %v348
    %vm449 = vcmp.eq.s32.totalorder %v69, %v348
    %vm450 = vcmp.eq.s32.totalorder %v70, %v348
    %vm451 = vcmp.eq.s32.totalorder %v71, %v348
    %vm452 = vcmp.eq.s32.totalorder %v68, %v351
    %vm453 = vcmp.eq.s32.totalorder %v69, %v351
    %vm454 = vcmp.eq.s32.totalorder %v70, %v351
    %vm455 = vcmp.eq.s32.totalorder %v71, %v351
    %vm456 = vcmp.eq.s32.totalorder %v68, %v354
    %vm457 = vcmp.eq.s32.totalorder %v69, %v354
    %vm458 = vcmp.eq.s32.totalorder %v70, %v354
    %vm459 = vcmp.eq.s32.totalorder %v71, %v354
    %vm460 = vcmp.eq.s32.totalorder %v68, %v357
    %vm461 = vcmp.eq.s32.totalorder %v69, %v357
    %vm462 = vcmp.eq.s32.totalorder %v70, %v357
    %vm463 = vcmp.eq.s32.totalorder %v71, %v357
    %vm464 = vcmp.eq.s32.totalorder %v68, %v360
    %vm465 = vcmp.eq.s32.totalorder %v69, %v360
    %vm466 = vcmp.eq.s32.totalorder %v70, %v360
    %vm467 = vcmp.eq.s32.totalorder %v71, %v360
    %vm468 = vcmp.eq.s32.totalorder %v68, %v363
    %vm469 = vcmp.eq.s32.totalorder %v69, %v363
    %vm470 = vcmp.eq.s32.totalorder %v70, %v363
    %vm471 = vcmp.eq.s32.totalorder %v71, %v363
    %vm472 = vcmp.eq.s32.totalorder %v68, %v366
    %vm473 = vcmp.eq.s32.totalorder %v69, %v366
    %vm474 = vcmp.eq.s32.totalorder %v70, %v366
    %vm475 = vcmp.eq.s32.totalorder %v71, %v366
    %vm476 = vcmp.eq.s32.totalorder %v68, %v369
    %vm477 = vcmp.eq.s32.totalorder %v69, %v369
    %vm478 = vcmp.eq.s32.totalorder %v70, %v369
    %vm479 = vcmp.eq.s32.totalorder %v71, %v369
    %vm480 = vcmp.eq.s32.totalorder %v68, %v372
    %vm481 = vcmp.eq.s32.totalorder %v69, %v372
    %vm482 = vcmp.eq.s32.totalorder %v70, %v372
    %vm483 = vcmp.eq.s32.totalorder %v71, %v372
    %vm484 = vcmp.eq.s32.totalorder %v68, %v375
    %vm485 = vcmp.eq.s32.totalorder %v69, %v375
    %vm486 = vcmp.eq.s32.totalorder %v70, %v375
    %vm487 = vcmp.eq.s32.totalorder %v71, %v375
    %vm488 = vcmp.eq.s32.totalorder %v68, %v378
    %vm489 = vcmp.eq.s32.totalorder %v69, %v378
    %vm490 = vcmp.eq.s32.totalorder %v70, %v378
    %vm491 = vcmp.eq.s32.totalorder %v71, %v378
    %vm492 = vcmp.eq.s32.totalorder %v68, %v381
    %vm493 = vcmp.eq.s32.totalorder %v69, %v381
    %vm494 = vcmp.eq.s32.totalorder %v70, %v381
    %vm495 = vcmp.eq.s32.totalorder %v71, %v381
    %vm496 = vcmp.eq.s32.totalorder %v68, %v384
    %vm497 = vcmp.eq.s32.totalorder %v69, %v384
    %vm498 = vcmp.eq.s32.totalorder %v70, %v384
    %vm499 = vcmp.eq.s32.totalorder %v71, %v384
    %vm500 = vcmp.eq.s32.totalorder %v68, %v387
    %vm501 = vcmp.eq.s32.totalorder %v69, %v387
    %vm502 = vcmp.eq.s32.totalorder %v70, %v387
    %vm503 = vcmp.eq.s32.totalorder %v71, %v387
    %vm504 = vcmp.eq.s32.totalorder %v68, %v390
    %vm505 = vcmp.eq.s32.totalorder %v69, %v390
    %vm506 = vcmp.eq.s32.totalorder %v70, %v390
    %vm507 = vcmp.eq.s32.totalorder %v71, %v390
    %vm508 = vcmp.eq.s32.totalorder %v68, %v393
    %vm509 = vcmp.eq.s32.totalorder %v69, %v393
    %vm510 = vcmp.eq.s32.totalorder %v70, %v393
    %vm511 = vcmp.eq.s32.totalorder %v71, %v393
    %vm512 = vcmp.eq.s32.totalorder %v68, %v396
    %vm513 = vcmp.eq.s32.totalorder %v69, %v396
    %vm514 = vcmp.eq.s32.totalorder %v70, %v396
    %vm515 = vcmp.eq.s32.totalorder %v71, %v396
    %vm516 = vcmp.eq.s32.totalorder %v68, %v399
    %vm517 = vcmp.eq.s32.totalorder %v69, %v399
    %vm518 = vcmp.eq.s32.totalorder %v70, %v399
    %vm519 = vcmp.eq.s32.totalorder %v71, %v399
    %vm520 = vcmp.eq.s32.totalorder %v68, %v402
    %vm521 = vcmp.eq.s32.totalorder %v69, %v402
    %vm522 = vcmp.eq.s32.totalorder %v70, %v402
    %vm523 = vcmp.eq.s32.totalorder %v71, %v402
    %vm524 = vcmp.eq.s32.totalorder %v68, %v405
    %vm525 = vcmp.eq.s32.totalorder %v69, %v405
    %vm526 = vcmp.eq.s32.totalorder %v70, %v405
    %vm527 = vcmp.eq.s32.totalorder %v71, %v405
    %vm528 = vcmp.eq.s32.totalorder %v68, %v408
    %vm529 = vcmp.eq.s32.totalorder %v69, %v408
    %vm530 = vcmp.eq.s32.totalorder %v70, %v408
    %vm531 = vcmp.eq.s32.totalorder %v71, %v408
    %vm532 = vcmp.eq.s32.totalorder %v68, %v411
    %vm533 = vcmp.eq.s32.totalorder %v69, %v411
    %vm534 = vcmp.eq.s32.totalorder %v70, %v411
    %vm535 = vcmp.eq.s32.totalorder %v71, %v411
    %vm536 = vcmp.eq.s32.totalorder %v68, %v414
    %vm537 = vcmp.eq.s32.totalorder %v69, %v414
    %vm538 = vcmp.eq.s32.totalorder %v70, %v414
    %vm539 = vcmp.eq.s32.totalorder %v71, %v414
    %vm540 = vcmp.eq.s32.totalorder %v68, %v417
    %vm541 = vcmp.eq.s32.totalorder %v69, %v417
    %vm542 = vcmp.eq.s32.totalorder %v70, %v417
    %vm543 = vcmp.eq.s32.totalorder %v71, %v417
    %vm544 = vcmp.eq.s32.totalorder %v68, %v420
    %vm545 = vcmp.eq.s32.totalorder %v69, %v420
    %vm546 = vcmp.eq.s32.totalorder %v70, %v420
    %vm547 = vcmp.eq.s32.totalorder %v71, %v420
    %vm548 = vcmp.eq.s32.totalorder %v68, %v423
    %vm549 = vcmp.eq.s32.totalorder %v69, %v423
    %vm550 = vcmp.eq.s32.totalorder %v70, %v423
    %vm551 = vcmp.eq.s32.totalorder %v71, %v423
    %vm552 = vmor %vm168, %vm424
    %vm553 = vmor %vm169, %vm425
    %vm554 = vmor %vm170, %vm426
    %vm555 = vmor %vm171, %vm427
    %vm556 = vmor %vm172, %vm428
    %vm557 = vmor %vm173, %vm429
    %vm558 = vmor %vm174, %vm430
    %vm559 = vmor %vm175, %vm431
    %vm560 = vmor %vm176, %vm432
    %vm561 = vmor %vm177, %vm433
    %vm562 = vmor %vm178, %vm434
    %vm563 = vmor %vm179, %vm435
    %vm564 = vmor %vm180, %vm436
    %vm565 = vmor %vm181, %vm437
    %vm566 = vmor %vm182, %vm438
    %vm567 = vmor %vm183, %vm439
    %vm568 = vmor %vm184, %vm440
    %vm569 = vmor %vm185, %vm441
    %vm570 = vmor %vm186, %vm442
    %vm571 = vmor %vm187, %vm443
    %vm572 = vmor %vm188, %vm444
    %vm573 = vmor %vm189, %vm445
    %vm574 = vmor %vm190, %vm446
    %vm575 = vmor %vm191, %vm447
    %vm576 = vmor %vm192, %vm448
    %vm577 = vmor %vm193, %vm449
    %vm578 = vmor %vm194, %vm450
    %vm579 = vmor %vm195, %vm451
    %vm580 = vmor %vm196, %vm452
    %vm581 = vmor %vm197, %vm453
    %vm582 = vmor %vm198, %vm454
    %vm583 = vmor %vm199, %vm455
    %vm584 = vmor %vm200, %vm456
    %vm585 = vmor %vm201, %vm457
    %vm586 = vmor %vm202, %vm458
    %vm587 = vmor %vm203, %vm459
    %vm588 = vmor %vm204, %vm460
    %vm589 = vmor %vm205, %vm461
    %vm590 = vmor %vm206, %vm462
    %vm591 = vmor %vm207, %vm463
    %vm592 = vmor %vm208, %vm464
    %vm593 = vmor %vm209, %vm465
    %vm594 = vmor %vm210, %vm466
    %vm595 = vmor %vm211, %vm467
    %vm596 = vmor %vm212, %vm468
    %vm597 = vmor %vm213, %vm469
    %vm598 = vmor %vm214, %vm470
    %vm599 = vmor %vm215, %vm471
    %vm600 = vmor %vm216, %vm472
    %vm601 = vmor %vm217, %vm473
    %vm602 = vmor %vm218, %vm474
    %vm603 = vmor %vm219, %vm475
    %vm604 = vmor %vm220, %vm476
    %vm605 = vmor %vm221, %vm477
    %vm606 = vmor %vm222, %vm478
    %vm607 = vmor %vm223, %vm479
    %vm608 = vmor %vm224, %vm480
    %vm609 = vmor %vm225, %vm481
    %vm610 = vmor %vm226, %vm482
    %vm611 = vmor %vm227, %vm483
    %vm612 = vmor %vm228, %vm484
    %vm613 = vmor %vm229, %vm485
    %vm614 = vmor %vm230, %vm486
    %vm615 = vmor %vm231, %vm487
    %vm616 = vmor %vm232, %vm488
    %vm617 = vmor %vm233, %vm489
    %vm618 = vmor %vm234, %vm490
    %vm619 = vmor %vm235, %vm491
    %vm620 = vmor %vm236, %vm492
    %vm621 = vmor %vm237, %vm493
    %vm622 = vmor %vm238, %vm494
    %vm623 = vmor %vm239, %vm495
    %vm624 = vmor %vm240, %vm496
    %vm625 = vmor %vm241, %vm497
    %vm626 = vmor %vm242, %vm498
    %vm627 = vmor %vm243, %vm499
    %vm628 = vmor %vm244, %vm500
    %vm629 = vmor %vm245, %vm501
    %vm630 = vmor %vm246, %vm502
    %vm631 = vmor %vm247, %vm503
    %vm632 = vmor %vm248, %vm504
    %vm633 = vmor %vm249, %vm505
    %vm634 = vmor %vm250, %vm506
    %vm635 = vmor %vm251, %vm507
    %vm636 = vmor %vm252, %vm508
    %vm637 = vmor %vm253, %vm509
    %vm638 = vmor %vm254, %vm510
    %vm639 = vmor %vm255, %vm511
    %vm640 = vmor %vm256, %vm512
    %vm641 = vmor %vm257, %vm513
    %vm642 = vmor %vm258, %vm514
    %vm643 = vmor %vm259, %vm515
    %vm644 = vmor %vm260, %vm516
    %vm645 = vmor %vm261, %vm517
    %vm646 = vmor %vm262, %vm518
    %vm647 = vmor %vm263, %vm519
    %vm648 = vmor %vm264, %vm520
    %vm649 = vmor %vm265, %vm521
    %vm650 = vmor %vm266, %vm522
    %vm651 = vmor %vm267, %vm523
    %vm652 = vmor %vm268, %vm524
    %vm653 = vmor %vm269, %vm525
    %vm654 = vmor %vm270, %vm526
    %vm655 = vmor %vm271, %vm527
    %vm656 = vmor %vm272, %vm528
    %vm657 = vmor %vm273, %vm529
    %vm658 = vmor %vm274, %vm530
    %vm659 = vmor %vm275, %vm531
    %vm660 = vmor %vm276, %vm532
    %vm661 = vmor %vm277, %vm533
    %vm662 = vmor %vm278, %vm534
    %vm663 = vmor %vm279, %vm535
    %vm664 = vmor %vm280, %vm536
    %vm665 = vmor %vm281, %vm537
    %vm666 = vmor %vm282, %vm538
    %vm667 = vmor %vm283, %vm539
    %vm668 = vmor %vm284, %vm540
    %vm669 = vmor %vm285, %vm541
    %vm670 = vmor %vm286, %vm542
    %vm671 = vmor %vm287, %vm543
    %vm672 = vmor %vm288, %vm544
    %vm673 = vmor %vm289, %vm545
    %vm674 = vmor %vm290, %vm546
    %vm675 = vmor %vm291, %vm547
    %vm676 = vmor %vm292, %vm548
    %vm677 = vmor %vm293, %vm549
    %vm678 = vmor %vm294, %vm550
    %vm679 = vmor %vm295, %vm551
    %v680 = vadd.s32 %v35, 256
    %v681 = vadd.s32 %v36, 256
    %v682 = vadd.s32 %v37, 256
    %v683 = vadd.s32 %v38, 256
    %v684 = vadd.s32 %v39, 256
    %v685 = vadd.s32 %v40, 256
    %v686 = vadd.s32 %v41, 256
    %v687 = vadd.s32 %v42, 256
    %v688 = vadd.s32 %v43, 256
    %v689 = vadd.s32 %v44, 256
    %v690 = vadd.s32 %v45, 256
    %v691 = vadd.s32 %v46, 256
    %v692 = vadd.s32 %v47, 256
    %v693 = vadd.s32 %v48, 256
    %v694 = vadd.s32 %v49, 256
    %v695 = vadd.s32 %v50, 256
    %v696 = vadd.s32 %v51, 256
    %v697 = vadd.s32 %v52, 256
    %v698 = vadd.s32 %v53, 256
    %v699 = vadd.s32 %v54, 256
    %v700 = vadd.s32 %v55, 256
    %v701 = vadd.s32 %v56, 256
    %v702 = vadd.s32 %v57, 256
    %v703 = vadd.s32 %v58, 256
    %v704 = vadd.s32 %v59, 256
    %v705 = vadd.s32 %v60, 256
    %v706 = vadd.s32 %v61, 256
    %v707 = vadd.s32 %v62, 256
    %v708 = vadd.s32 %v63, 256
    %v709 = vadd.s32 %v64, 256
    %v710 = vadd.s32 %v65, 256
    %v711 = vadd.s32 %v66, 256
    %712 = vset.pattern.permute.xlu0 2
    %713 = vperm.xlu0 %712, %v680
    %v714 = vpop.permute.xlu0 %713
    %715 = vset.pattern.permute.xlu0 2
    %716 = vperm.xlu0 %715, %v681
    %v717 = vpop.permute.xlu0 %716
    %718 = vset.pattern.permute.xlu0 2
    %719 = vperm.xlu0 %718, %v682
    %v720 = vpop.permute.xlu0 %719
    %721 = vset.pattern.permute.xlu0 2
    %722 = vperm.xlu0 %721, %v683
    %v723 = vpop.permute.xlu0 %722
    %724 = vset.pattern.permute.xlu0 2
    %725 = vperm.xlu0 %724, %v684
    %v726 = vpop.permute.xlu0 %725
    %727 = vset.pattern.permute.xlu0 2
    %728 = vperm.xlu0 %727, %v685
    %v729 = vpop.permute.xlu0 %728
    %730 = vset.pattern.permute.xlu0 2
    %731 = vperm.xlu0 %730, %v686
    %v732 = vpop.permute.xlu0 %731
    %733 = vset.pattern.permute.xlu0 2
    %734 = vperm.xlu0 %733, %v687
    %v735 = vpop.permute.xlu0 %734
    %736 = vset.pattern.permute.xlu0 2
    %737 = vperm.xlu0 %736, %v688
    %v738 = vpop.permute.xlu0 %737
    %739 = vset.pattern.permute.xlu0 2
    %740 = vperm.xlu0 %739, %v689
    %v741 = vpop.permute.xlu0 %740
    %742 = vset.pattern.permute.xlu0 2
    %743 = vperm.xlu0 %742, %v690
    %v744 = vpop.permute.xlu0 %743
    %745 = vset.pattern.permute.xlu0 2
    %746 = vperm.xlu0 %745, %v691
    %v747 = vpop.permute.xlu0 %746
    %748 = vset.pattern.permute.xlu0 2
    %749 = vperm.xlu0 %748, %v692
    %v750 = vpop.permute.xlu0 %749
    %751 = vset.pattern.permute.xlu0 2
    %752 = vperm.xlu0 %751, %v693
    %v753 = vpop.permute.xlu0 %752
    %754 = vset.pattern.permute.xlu0 2
    %755 = vperm.xlu0 %754, %v694
    %v756 = vpop.permute.xlu0 %755
    %757 = vset.pattern.permute.xlu0 2
    %758 = vperm.xlu0 %757, %v695
    %v759 = vpop.permute.xlu0 %758
    %760 = vset.pattern.permute.xlu0 2
    %761 = vperm.xlu0 %760, %v696
    %v762 = vpop.permute.xlu0 %761
    %763 = vset.pattern.permute.xlu0 2
    %764 = vperm.xlu0 %763, %v697
    %v765 = vpop.permute.xlu0 %764
    %766 = vset.pattern.permute.xlu0 2
    %767 = vperm.xlu0 %766, %v698
    %v768 = vpop.permute.xlu0 %767
    %769 = vset.pattern.permute.xlu0 2
    %770 = vperm.xlu0 %769, %v699
    %v771 = vpop.permute.xlu0 %770
    %772 = vset.pattern.permute.xlu0 2
    %773 = vperm.xlu0 %772, %v700
    %v774 = vpop.permute.xlu0 %773
    %775 = vset.pattern.permute.xlu0 2
    %776 = vperm.xlu0 %775, %v701
    %v777 = vpop.permute.xlu0 %776
    %778 = vset.pattern.permute.xlu0 2
    %779 = vperm.xlu0 %778, %v702
    %v780 = vpop.permute.xlu0 %779
    %781 = vset.pattern.permute.xlu0 2
    %782 = vperm.xlu0 %781, %v703
    %v783 = vpop.permute.xlu0 %782
    %784 = vset.pattern.permute.xlu0 2
    %785 = vperm.xlu0 %784, %v704
    %v786 = vpop.permute.xlu0 %785
    %787 = vset.pattern.permute.xlu0 2
    %788 = vperm.xlu0 %787, %v705
    %v789 = vpop.permute.xlu0 %788
    %790 = vset.pattern.permute.xlu0 2
    %791 = vperm.xlu0 %790, %v706
    %v792 = vpop.permute.xlu0 %791
    %793 = vset.pattern.permute.xlu0 2
    %794 = vperm.xlu0 %793, %v707
    %v795 = vpop.permute.xlu0 %794
    %796 = vset.pattern.permute.xlu0 2
    %797 = vperm.xlu0 %796, %v708
    %v798 = vpop.permute.xlu0 %797
    %799 = vset.pattern.permute.xlu0 2
    %800 = vperm.xlu0 %799, %v709
    %v801 = vpop.permute.xlu0 %800
    %802 = vset.pattern.permute.xlu0 2
    %803 = vperm.xlu0 %802, %v710
    %v804 = vpop.permute.xlu0 %803
    %805 = vset.pattern.permute.xlu0 2
    %806 = vperm.xlu0 %805, %v711
    %v807 = vpop.permute.xlu0 %806
    %vm808 = vcmp.eq.s32.totalorder %v68, %v714
    %vm809 = vcmp.eq.s32.totalorder %v69, %v714
    %vm810 = vcmp.eq.s32.totalorder %v70, %v714
    %vm811 = vcmp.eq.s32.totalorder %v71, %v714
    %vm812 = vcmp.eq.s32.totalorder %v68, %v717
    %vm813 = vcmp.eq.s32.totalorder %v69, %v717
    %vm814 = vcmp.eq.s32.totalorder %v70, %v717
    %vm815 = vcmp.eq.s32.totalorder %v71, %v717
    %vm816 = vcmp.eq.s32.totalorder %v68, %v720
    %vm817 = vcmp.eq.s32.totalorder %v69, %v720
    %vm818 = vcmp.eq.s32.totalorder %v70, %v720
    %vm819 = vcmp.eq.s32.totalorder %v71, %v720
    %vm820 = vcmp.eq.s32.totalorder %v68, %v723
    %vm821 = vcmp.eq.s32.totalorder %v69, %v723
    %vm822 = vcmp.eq.s32.totalorder %v70, %v723
    %vm823 = vcmp.eq.s32.totalorder %v71, %v723
    %vm824 = vcmp.eq.s32.totalorder %v68, %v726
    %vm825 = vcmp.eq.s32.totalorder %v69, %v726
    %vm826 = vcmp.eq.s32.totalorder %v70, %v726
    %vm827 = vcmp.eq.s32.totalorder %v71, %v726
    %vm828 = vcmp.eq.s32.totalorder %v68, %v729
    %vm829 = vcmp.eq.s32.totalorder %v69, %v729
    %vm830 = vcmp.eq.s32.totalorder %v70, %v729
    %vm831 = vcmp.eq.s32.totalorder %v71, %v729
    %vm832 = vcmp.eq.s32.totalorder %v68, %v732
    %vm833 = vcmp.eq.s32.totalorder %v69, %v732
    %vm834 = vcmp.eq.s32.totalorder %v70, %v732
    %vm835 = vcmp.eq.s32.totalorder %v71, %v732
    %vm836 = vcmp.eq.s32.totalorder %v68, %v735
    %vm837 = vcmp.eq.s32.totalorder %v69, %v735
    %vm838 = vcmp.eq.s32.totalorder %v70, %v735
    %vm839 = vcmp.eq.s32.totalorder %v71, %v735
    %vm840 = vcmp.eq.s32.totalorder %v68, %v738
    %vm841 = vcmp.eq.s32.totalorder %v69, %v738
    %vm842 = vcmp.eq.s32.totalorder %v70, %v738
    %vm843 = vcmp.eq.s32.totalorder %v71, %v738
    %vm844 = vcmp.eq.s32.totalorder %v68, %v741
    %vm845 = vcmp.eq.s32.totalorder %v69, %v741
    %vm846 = vcmp.eq.s32.totalorder %v70, %v741
    %vm847 = vcmp.eq.s32.totalorder %v71, %v741
    %vm848 = vcmp.eq.s32.totalorder %v68, %v744
    %vm849 = vcmp.eq.s32.totalorder %v69, %v744
    %vm850 = vcmp.eq.s32.totalorder %v70, %v744
    %vm851 = vcmp.eq.s32.totalorder %v71, %v744
    %vm852 = vcmp.eq.s32.totalorder %v68, %v747
    %vm853 = vcmp.eq.s32.totalorder %v69, %v747
    %vm854 = vcmp.eq.s32.totalorder %v70, %v747
    %vm855 = vcmp.eq.s32.totalorder %v71, %v747
    %vm856 = vcmp.eq.s32.totalorder %v68, %v750
    %vm857 = vcmp.eq.s32.totalorder %v69, %v750
    %vm858 = vcmp.eq.s32.totalorder %v70, %v750
    %vm859 = vcmp.eq.s32.totalorder %v71, %v750
    %vm860 = vcmp.eq.s32.totalorder %v68, %v753
    %vm861 = vcmp.eq.s32.totalorder %v69, %v753
    %vm862 = vcmp.eq.s32.totalorder %v70, %v753
    %vm863 = vcmp.eq.s32.totalorder %v71, %v753
    %vm864 = vcmp.eq.s32.totalorder %v68, %v756
    %vm865 = vcmp.eq.s32.totalorder %v69, %v756
    %vm866 = vcmp.eq.s32.totalorder %v70, %v756
    %vm867 = vcmp.eq.s32.totalorder %v71, %v756
    %vm868 = vcmp.eq.s32.totalorder %v68, %v759
    %vm869 = vcmp.eq.s32.totalorder %v69, %v759
    %vm870 = vcmp.eq.s32.totalorder %v70, %v759
    %vm871 = vcmp.eq.s32.totalorder %v71, %v759
    %vm872 = vcmp.eq.s32.totalorder %v68, %v762
    %vm873 = vcmp.eq.s32.totalorder %v69, %v762
    %vm874 = vcmp.eq.s32.totalorder %v70, %v762
    %vm875 = vcmp.eq.s32.totalorder %v71, %v762
    %vm876 = vcmp.eq.s32.totalorder %v68, %v765
    %vm877 = vcmp.eq.s32.totalorder %v69, %v765
    %vm878 = vcmp.eq.s32.totalorder %v70, %v765
    %vm879 = vcmp.eq.s32.totalorder %v71, %v765
    %vm880 = vcmp.eq.s32.totalorder %v68, %v768
    %vm881 = vcmp.eq.s32.totalorder %v69, %v768
    %vm882 = vcmp.eq.s32.totalorder %v70, %v768
    %vm883 = vcmp.eq.s32.totalorder %v71, %v768
    %vm884 = vcmp.eq.s32.totalorder %v68, %v771
    %vm885 = vcmp.eq.s32.totalorder %v69, %v771
    %vm886 = vcmp.eq.s32.totalorder %v70, %v771
    %vm887 = vcmp.eq.s32.totalorder %v71, %v771
    %vm888 = vcmp.eq.s32.totalorder %v68, %v774
    %vm889 = vcmp.eq.s32.totalorder %v69, %v774
    %vm890 = vcmp.eq.s32.totalorder %v70, %v774
    %vm891 = vcmp.eq.s32.totalorder %v71, %v774
    %vm892 = vcmp.eq.s32.totalorder %v68, %v777
    %vm893 = vcmp.eq.s32.totalorder %v69, %v777
    %vm894 = vcmp.eq.s32.totalorder %v70, %v777
    %vm895 = vcmp.eq.s32.totalorder %v71, %v777
    %vm896 = vcmp.eq.s32.totalorder %v68, %v780
    %vm897 = vcmp.eq.s32.totalorder %v69, %v780
    %vm898 = vcmp.eq.s32.totalorder %v70, %v780
    %vm899 = vcmp.eq.s32.totalorder %v71, %v780
    %vm900 = vcmp.eq.s32.totalorder %v68, %v783
    %vm901 = vcmp.eq.s32.totalorder %v69, %v783
    %vm902 = vcmp.eq.s32.totalorder %v70, %v783
    %vm903 = vcmp.eq.s32.totalorder %v71, %v783
    %vm904 = vcmp.eq.s32.totalorder %v68, %v786
    %vm905 = vcmp.eq.s32.totalorder %v69, %v786
    %vm906 = vcmp.eq.s32.totalorder %v70, %v786
    %vm907 = vcmp.eq.s32.totalorder %v71, %v786
    %vm908 = vcmp.eq.s32.totalorder %v68, %v789
    %vm909 = vcmp.eq.s32.totalorder %v69, %v789
    %vm910 = vcmp.eq.s32.totalorder %v70, %v789
    %vm911 = vcmp.eq.s32.totalorder %v71, %v789
    %vm912 = vcmp.eq.s32.totalorder %v68, %v792
    %vm913 = vcmp.eq.s32.totalorder %v69, %v792
    %vm914 = vcmp.eq.s32.totalorder %v70, %v792
    %vm915 = vcmp.eq.s32.totalorder %v71, %v792
    %vm916 = vcmp.eq.s32.totalorder %v68, %v795
    %vm917 = vcmp.eq.s32.totalorder %v69, %v795
    %vm918 = vcmp.eq.s32.totalorder %v70, %v795
    %vm919 = vcmp.eq.s32.totalorder %v71, %v795
    %vm920 = vcmp.eq.s32.totalorder %v68, %v798
    %vm921 = vcmp.eq.s32.totalorder %v69, %v798
    %vm922 = vcmp.eq.s32.totalorder %v70, %v798
    %vm923 = vcmp.eq.s32.totalorder %v71, %v798
    %vm924 = vcmp.eq.s32.totalorder %v68, %v801
    %vm925 = vcmp.eq.s32.totalorder %v69, %v801
    %vm926 = vcmp.eq.s32.totalorder %v70, %v801
    %vm927 = vcmp.eq.s32.totalorder %v71, %v801
    %vm928 = vcmp.eq.s32.totalorder %v68, %v804
    %vm929 = vcmp.eq.s32.totalorder %v69, %v804
    %vm930 = vcmp.eq.s32.totalorder %v70, %v804
    %vm931 = vcmp.eq.s32.totalorder %v71, %v804
    %vm932 = vcmp.eq.s32.totalorder %v68, %v807
    %vm933 = vcmp.eq.s32.totalorder %v69, %v807
    %vm934 = vcmp.eq.s32.totalorder %v70, %v807
    %vm935 = vcmp.eq.s32.totalorder %v71, %v807
    %vm936 = vmor %vm552, %vm808
    %vm937 = vmor %vm553, %vm809
    %vm938 = vmor %vm554, %vm810
    %vm939 = vmor %vm555, %vm811
    %vm940 = vmor %vm556, %vm812
    %vm941 = vmor %vm557, %vm813
    %vm942 = vmor %vm558, %vm814
    %vm943 = vmor %vm559, %vm815
    %vm944 = vmor %vm560, %vm816
    %vm945 = vmor %vm561, %vm817
    %vm946 = vmor %vm562, %vm818
    %vm947 = vmor %vm563, %vm819
    %vm948 = vmor %vm564, %vm820
    %vm949 = vmor %vm565, %vm821
    %vm950 = vmor %vm566, %vm822
    %vm951 = vmor %vm567, %vm823
    %vm952 = vmor %vm568, %vm824
    %vm953 = vmor %vm569, %vm825
    %vm954 = vmor %vm570, %vm826
    %vm955 = vmor %vm571, %vm827
    %vm956 = vmor %vm572, %vm828
    %vm957 = vmor %vm573, %vm829
    %vm958 = vmor %vm574, %vm830
    %vm959 = vmor %vm575, %vm831
    %vm960 = vmor %vm576, %vm832
    %vm961 = vmor %vm577, %vm833
    %vm962 = vmor %vm578, %vm834
    %vm963 = vmor %vm579, %vm835
    %vm964 = vmor %vm580, %vm836
    %vm965 = vmor %vm581, %vm837
    %vm966 = vmor %vm582, %vm838
    %vm967 = vmor %vm583, %vm839
    %vm968 = vmor %vm584, %vm840
    %vm969 = vmor %vm585, %vm841
    %vm970 = vmor %vm586, %vm842
    %vm971 = vmor %vm587, %vm843
    %vm972 = vmor %vm588, %vm844
    %vm973 = vmor %vm589, %vm845
    %vm974 = vmor %vm590, %vm846
    %vm975 = vmor %vm591, %vm847
    %vm976 = vmor %vm592, %vm848
    %vm977 = vmor %vm593, %vm849
    %vm978 = vmor %vm594, %vm850
    %vm979 = vmor %vm595, %vm851
    %vm980 = vmor %vm596, %vm852
    %vm981 = vmor %vm597, %vm853
    %vm982 = vmor %vm598, %vm854
    %vm983 = vmor %vm599, %vm855
    %vm984 = vmor %vm600, %vm856
    %vm985 = vmor %vm601, %vm857
    %vm986 = vmor %vm602, %vm858
    %vm987 = vmor %vm603, %vm859
    %vm988 = vmor %vm604, %vm860
    %vm989 = vmor %vm605, %vm861
    %vm990 = vmor %vm606, %vm862
    %vm991 = vmor %vm607, %vm863
    %vm992 = vmor %vm608, %vm864
    %vm993 = vmor %vm609, %vm865
    %vm994 = vmor %vm610, %vm866
    %vm995 = vmor %vm611, %vm867
    %vm996 = vmor %vm612, %vm868
    %vm997 = vmor %vm613, %vm869
    %vm998 = vmor %vm614, %vm870
    %vm999 = vmor %vm615, %vm871
    %vm1000 = vmor %vm616, %vm872
    %vm1001 = vmor %vm617, %vm873
    %vm1002 = vmor %vm618, %vm874
    %vm1003 = vmor %vm619, %vm875
    %vm1004 = vmor %vm620, %vm876
    %vm1005 = vmor %vm621, %vm877
    %vm1006 = vmor %vm622, %vm878
    %vm1007 = vmor %vm623, %vm879
    %vm1008 = vmor %vm624, %vm880
    %vm1009 = vmor %vm625, %vm881
    %vm1010 = vmor %vm626, %vm882
    %vm1011 = vmor %vm627, %vm883
    %vm1012 = vmor %vm628, %vm884
    %vm1013 = vmor %vm629, %vm885
    %vm1014 = vmor %vm630, %vm886
    %vm1015 = vmor %vm631, %vm887
    %vm1016 = vmor %vm632, %vm888
    %vm1017 = vmor %vm633, %vm889
    %vm1018 = vmor %vm634, %vm890
    %vm1019 = vmor %vm635, %vm891
    %vm1020 = vmor %vm636, %vm892
    %vm1021 = vmor %vm637, %vm893
    %vm1022 = vmor %vm638, %vm894
    %vm1023 = vmor %vm639, %vm895
    %vm1024 = vmor %vm640, %vm896
    %vm1025 = vmor %vm641, %vm897
    %vm1026 = vmor %vm642, %vm898
    %vm1027 = vmor %vm643, %vm899
    %vm1028 = vmor %vm644, %vm900
    %vm1029 = vmor %vm645, %vm901
    %vm1030 = vmor %vm646, %vm902
    %vm1031 = vmor %vm647, %vm903
    %vm1032 = vmor %vm648, %vm904
    %vm1033 = vmor %vm649, %vm905
    %vm1034 = vmor %vm650, %vm906
    %vm1035 = vmor %vm651, %vm907
    %vm1036 = vmor %vm652, %vm908
    %vm1037 = vmor %vm653, %vm909
    %vm1038 = vmor %vm654, %vm910
    %vm1039 = vmor %vm655, %vm911
    %vm1040 = vmor %vm656, %vm912
    %vm1041 = vmor %vm657, %vm913
    %vm1042 = vmor %vm658, %vm914
    %vm1043 = vmor %vm659, %vm915
    %vm1044 = vmor %vm660, %vm916
    %vm1045 = vmor %vm661, %vm917
    %vm1046 = vmor %vm662, %vm918
    %vm1047 = vmor %vm663, %vm919
    %vm1048 = vmor %vm664, %vm920
    %vm1049 = vmor %vm665, %vm921
    %vm1050 = vmor %vm666, %vm922
    %vm1051 = vmor %vm667, %vm923
    %vm1052 = vmor %vm668, %vm924
    %vm1053 = vmor %vm669, %vm925
    %vm1054 = vmor %vm670, %vm926
    %vm1055 = vmor %vm671, %vm927
    %vm1056 = vmor %vm672, %vm928
    %vm1057 = vmor %vm673, %vm929
    %vm1058 = vmor %vm674, %vm930
    %vm1059 = vmor %vm675, %vm931
    %vm1060 = vmor %vm676, %vm932
    %vm1061 = vmor %vm677, %vm933
    %vm1062 = vmor %vm678, %vm934
    %vm1063 = vmor %vm679, %vm935
    %v1064 = vadd.s32 %v35, 384
    %v1065 = vadd.s32 %v36, 384
    %v1066 = vadd.s32 %v37, 384
    %v1067 = vadd.s32 %v38, 384
    %v1068 = vadd.s32 %v39, 384
    %v1069 = vadd.s32 %v40, 384
    %v1070 = vadd.s32 %v41, 384
    %v1071 = vadd.s32 %v42, 384
    %v1072 = vadd.s32 %v43, 384
    %v1073 = vadd.s32 %v44, 384
    %v1074 = vadd.s32 %v45, 384
    %v1075 = vadd.s32 %v46, 384
    %v1076 = vadd.s32 %v47, 384
    %v1077 = vadd.s32 %v48, 384
    %v1078 = vadd.s32 %v49, 384
    %v1079 = vadd.s32 %v50, 384
    %v1080 = vadd.s32 %v51, 384
    %v1081 = vadd.s32 %v52, 384
    %v1082 = vadd.s32 %v53, 384
    %v1083 = vadd.s32 %v54, 384
    %v1084 = vadd.s32 %v55, 384
    %v1085 = vadd.s32 %v56, 384
    %v1086 = vadd.s32 %v57, 384
    %v1087 = vadd.s32 %v58, 384
    %v1088 = vadd.s32 %v59, 384
    %v1089 = vadd.s32 %v60, 384
    %v1090 = vadd.s32 %v61, 384
    %v1091 = vadd.s32 %v62, 384
    %v1092 = vadd.s32 %v63, 384
    %v1093 = vadd.s32 %v64, 384
    %v1094 = vadd.s32 %v65, 384
    %v1095 = vadd.s32 %v66, 384
    %1096 = vset.pattern.permute.xlu0 3
    %1097 = vperm.xlu0 %1096, %v1064
    %v1098 = vpop.permute.xlu0 %1097
    %1099 = vset.pattern.permute.xlu0 3
    %1100 = vperm.xlu0 %1099, %v1065
    %v1101 = vpop.permute.xlu0 %1100
    %1102 = vset.pattern.permute.xlu0 3
    %1103 = vperm.xlu0 %1102, %v1066
    %v1104 = vpop.permute.xlu0 %1103
    %1105 = vset.pattern.permute.xlu0 3
    %1106 = vperm.xlu0 %1105, %v1067
    %v1107 = vpop.permute.xlu0 %1106
    %1108 = vset.pattern.permute.xlu0 3
    %1109 = vperm.xlu0 %1108, %v1068
    %v1110 = vpop.permute.xlu0 %1109
    %1111 = vset.pattern.permute.xlu0 3
    %1112 = vperm.xlu0 %1111, %v1069
    %v1113 = vpop.permute.xlu0 %1112
    %1114 = vset.pattern.permute.xlu0 3
    %1115 = vperm.xlu0 %1114, %v1070
    %v1116 = vpop.permute.xlu0 %1115
    %1117 = vset.pattern.permute.xlu0 3
    %1118 = vperm.xlu0 %1117, %v1071
    %v1119 = vpop.permute.xlu0 %1118
    %1120 = vset.pattern.permute.xlu0 3
    %1121 = vperm.xlu0 %1120, %v1072
    %v1122 = vpop.permute.xlu0 %1121
    %1123 = vset.pattern.permute.xlu0 3
    %1124 = vperm.xlu0 %1123, %v1073
    %v1125 = vpop.permute.xlu0 %1124
    %1126 = vset.pattern.permute.xlu0 3
    %1127 = vperm.xlu0 %1126, %v1074
    %v1128 = vpop.permute.xlu0 %1127
    %1129 = vset.pattern.permute.xlu0 3
    %1130 = vperm.xlu0 %1129, %v1075
    %v1131 = vpop.permute.xlu0 %1130
    %1132 = vset.pattern.permute.xlu0 3
    %1133 = vperm.xlu0 %1132, %v1076
    %v1134 = vpop.permute.xlu0 %1133
    %1135 = vset.pattern.permute.xlu0 3
    %1136 = vperm.xlu0 %1135, %v1077
    %v1137 = vpop.permute.xlu0 %1136
    %1138 = vset.pattern.permute.xlu0 3
    %1139 = vperm.xlu0 %1138, %v1078
    %v1140 = vpop.permute.xlu0 %1139
    %1141 = vset.pattern.permute.xlu0 3
    %1142 = vperm.xlu0 %1141, %v1079
    %v1143 = vpop.permute.xlu0 %1142
    %1144 = vset.pattern.permute.xlu0 3
    %1145 = vperm.xlu0 %1144, %v1080
    %v1146 = vpop.permute.xlu0 %1145
    %1147 = vset.pattern.permute.xlu0 3
    %1148 = vperm.xlu0 %1147, %v1081
    %v1149 = vpop.permute.xlu0 %1148
    %1150 = vset.pattern.permute.xlu0 3
    %1151 = vperm.xlu0 %1150, %v1082
    %v1152 = vpop.permute.xlu0 %1151
    %1153 = vset.pattern.permute.xlu0 3
    %1154 = vperm.xlu0 %1153, %v1083
    %v1155 = vpop.permute.xlu0 %1154
    %1156 = vset.pattern.permute.xlu0 3
    %1157 = vperm.xlu0 %1156, %v1084
    %v1158 = vpop.permute.xlu0 %1157
    %1159 = vset.pattern.permute.xlu0 3
    %1160 = vperm.xlu0 %1159, %v1085
    %v1161 = vpop.permute.xlu0 %1160
    %1162 = vset.pattern.permute.xlu0 3
    %1163 = vperm.xlu0 %1162, %v1086
    %v1164 = vpop.permute.xlu0 %1163
    %1165 = vset.pattern.permute.xlu0 3
    %1166 = vperm.xlu0 %1165, %v1087
    %v1167 = vpop.permute.xlu0 %1166
    %1168 = vset.pattern.permute.xlu0 3
    %1169 = vperm.xlu0 %1168, %v1088
    %v1170 = vpop.permute.xlu0 %1169
    %1171 = vset.pattern.permute.xlu0 3
    %1172 = vperm.xlu0 %1171, %v1089
    %v1173 = vpop.permute.xlu0 %1172
    %1174 = vset.pattern.permute.xlu0 3
    %1175 = vperm.xlu0 %1174, %v1090
    %v1176 = vpop.permute.xlu0 %1175
    %1177 = vset.pattern.permute.xlu0 3
    %1178 = vperm.xlu0 %1177, %v1091
    %v1179 = vpop.permute.xlu0 %1178
    %1180 = vset.pattern.permute.xlu0 3
    %1181 = vperm.xlu0 %1180, %v1092
    %v1182 = vpop.permute.xlu0 %1181
    %1183 = vset.pattern.permute.xlu0 3
    %1184 = vperm.xlu0 %1183, %v1093
    %v1185 = vpop.permute.xlu0 %1184
    %1186 = vset.pattern.permute.xlu0 3
    %1187 = vperm.xlu0 %1186, %v1094
    %v1188 = vpop.permute.xlu0 %1187
    %1189 = vset.pattern.permute.xlu0 3
    %1190 = vperm.xlu0 %1189, %v1095
    %v1191 = vpop.permute.xlu0 %1190
    %vm1192 = vcmp.eq.s32.totalorder %v68, %v1098
    %vm1193 = vcmp.eq.s32.totalorder %v69, %v1098
    %vm1194 = vcmp.eq.s32.totalorder %v70, %v1098
    %vm1195 = vcmp.eq.s32.totalorder %v71, %v1098
    %vm1196 = vcmp.eq.s32.totalorder %v68, %v1101
    %vm1197 = vcmp.eq.s32.totalorder %v69, %v1101
    %vm1198 = vcmp.eq.s32.totalorder %v70, %v1101
    %vm1199 = vcmp.eq.s32.totalorder %v71, %v1101
    %vm1200 = vcmp.eq.s32.totalorder %v68, %v1104
    %vm1201 = vcmp.eq.s32.totalorder %v69, %v1104
    %vm1202 = vcmp.eq.s32.totalorder %v70, %v1104
    %vm1203 = vcmp.eq.s32.totalorder %v71, %v1104
    %vm1204 = vcmp.eq.s32.totalorder %v68, %v1107
    %vm1205 = vcmp.eq.s32.totalorder %v69, %v1107
    %vm1206 = vcmp.eq.s32.totalorder %v70, %v1107
    %vm1207 = vcmp.eq.s32.totalorder %v71, %v1107
    %vm1208 = vcmp.eq.s32.totalorder %v68, %v1110
    %vm1209 = vcmp.eq.s32.totalorder %v69, %v1110
    %vm1210 = vcmp.eq.s32.totalorder %v70, %v1110
    %vm1211 = vcmp.eq.s32.totalorder %v71, %v1110
    %vm1212 = vcmp.eq.s32.totalorder %v68, %v1113
    %vm1213 = vcmp.eq.s32.totalorder %v69, %v1113
    %vm1214 = vcmp.eq.s32.totalorder %v70, %v1113
    %vm1215 = vcmp.eq.s32.totalorder %v71, %v1113
    %vm1216 = vcmp.eq.s32.totalorder %v68, %v1116
    %vm1217 = vcmp.eq.s32.totalorder %v69, %v1116
    %vm1218 = vcmp.eq.s32.totalorder %v70, %v1116
    %vm1219 = vcmp.eq.s32.totalorder %v71, %v1116
    %vm1220 = vcmp.eq.s32.totalorder %v68, %v1119
    %vm1221 = vcmp.eq.s32.totalorder %v69, %v1119
    %vm1222 = vcmp.eq.s32.totalorder %v70, %v1119
    %vm1223 = vcmp.eq.s32.totalorder %v71, %v1119
    %vm1224 = vcmp.eq.s32.totalorder %v68, %v1122
    %vm1225 = vcmp.eq.s32.totalorder %v69, %v1122
    %vm1226 = vcmp.eq.s32.totalorder %v70, %v1122
    %vm1227 = vcmp.eq.s32.totalorder %v71, %v1122
    %vm1228 = vcmp.eq.s32.totalorder %v68, %v1125
    %vm1229 = vcmp.eq.s32.totalorder %v69, %v1125
    %vm1230 = vcmp.eq.s32.totalorder %v70, %v1125
    %vm1231 = vcmp.eq.s32.totalorder %v71, %v1125
    %vm1232 = vcmp.eq.s32.totalorder %v68, %v1128
    %vm1233 = vcmp.eq.s32.totalorder %v69, %v1128
    %vm1234 = vcmp.eq.s32.totalorder %v70, %v1128
    %vm1235 = vcmp.eq.s32.totalorder %v71, %v1128
    %vm1236 = vcmp.eq.s32.totalorder %v68, %v1131
    %vm1237 = vcmp.eq.s32.totalorder %v69, %v1131
    %vm1238 = vcmp.eq.s32.totalorder %v70, %v1131
    %vm1239 = vcmp.eq.s32.totalorder %v71, %v1131
    %vm1240 = vcmp.eq.s32.totalorder %v68, %v1134
    %vm1241 = vcmp.eq.s32.totalorder %v69, %v1134
    %vm1242 = vcmp.eq.s32.totalorder %v70, %v1134
    %vm1243 = vcmp.eq.s32.totalorder %v71, %v1134
    %vm1244 = vcmp.eq.s32.totalorder %v68, %v1137
    %vm1245 = vcmp.eq.s32.totalorder %v69, %v1137
    %vm1246 = vcmp.eq.s32.totalorder %v70, %v1137
    %vm1247 = vcmp.eq.s32.totalorder %v71, %v1137
    %vm1248 = vcmp.eq.s32.totalorder %v68, %v1140
    %vm1249 = vcmp.eq.s32.totalorder %v69, %v1140
    %vm1250 = vcmp.eq.s32.totalorder %v70, %v1140
    %vm1251 = vcmp.eq.s32.totalorder %v71, %v1140
    %vm1252 = vcmp.eq.s32.totalorder %v68, %v1143
    %vm1253 = vcmp.eq.s32.totalorder %v69, %v1143
    %vm1254 = vcmp.eq.s32.totalorder %v70, %v1143
    %vm1255 = vcmp.eq.s32.totalorder %v71, %v1143
    %vm1256 = vcmp.eq.s32.totalorder %v68, %v1146
    %vm1257 = vcmp.eq.s32.totalorder %v69, %v1146
    %vm1258 = vcmp.eq.s32.totalorder %v70, %v1146
    %vm1259 = vcmp.eq.s32.totalorder %v71, %v1146
    %vm1260 = vcmp.eq.s32.totalorder %v68, %v1149
    %vm1261 = vcmp.eq.s32.totalorder %v69, %v1149
    %vm1262 = vcmp.eq.s32.totalorder %v70, %v1149
    %vm1263 = vcmp.eq.s32.totalorder %v71, %v1149
    %vm1264 = vcmp.eq.s32.totalorder %v68, %v1152
    %vm1265 = vcmp.eq.s32.totalorder %v69, %v1152
    %vm1266 = vcmp.eq.s32.totalorder %v70, %v1152
    %vm1267 = vcmp.eq.s32.totalorder %v71, %v1152
    %vm1268 = vcmp.eq.s32.totalorder %v68, %v1155
    %vm1269 = vcmp.eq.s32.totalorder %v69, %v1155
    %vm1270 = vcmp.eq.s32.totalorder %v70, %v1155
    %vm1271 = vcmp.eq.s32.totalorder %v71, %v1155
    %vm1272 = vcmp.eq.s32.totalorder %v68, %v1158
    %vm1273 = vcmp.eq.s32.totalorder %v69, %v1158
    %vm1274 = vcmp.eq.s32.totalorder %v70, %v1158
    %vm1275 = vcmp.eq.s32.totalorder %v71, %v1158
    %vm1276 = vcmp.eq.s32.totalorder %v68, %v1161
    %vm1277 = vcmp.eq.s32.totalorder %v69, %v1161
    %vm1278 = vcmp.eq.s32.totalorder %v70, %v1161
    %vm1279 = vcmp.eq.s32.totalorder %v71, %v1161
    %vm1280 = vcmp.eq.s32.totalorder %v68, %v1164
    %vm1281 = vcmp.eq.s32.totalorder %v69, %v1164
    %vm1282 = vcmp.eq.s32.totalorder %v70, %v1164
    %vm1283 = vcmp.eq.s32.totalorder %v71, %v1164
    %vm1284 = vcmp.eq.s32.totalorder %v68, %v1167
    %vm1285 = vcmp.eq.s32.totalorder %v69, %v1167
    %vm1286 = vcmp.eq.s32.totalorder %v70, %v1167
    %vm1287 = vcmp.eq.s32.totalorder %v71, %v1167
    %vm1288 = vcmp.eq.s32.totalorder %v68, %v1170
    %vm1289 = vcmp.eq.s32.totalorder %v69, %v1170
    %vm1290 = vcmp.eq.s32.totalorder %v70, %v1170
    %vm1291 = vcmp.eq.s32.totalorder %v71, %v1170
    %vm1292 = vcmp.eq.s32.totalorder %v68, %v1173
    %vm1293 = vcmp.eq.s32.totalorder %v69, %v1173
    %vm1294 = vcmp.eq.s32.totalorder %v70, %v1173
    %vm1295 = vcmp.eq.s32.totalorder %v71, %v1173
    %vm1296 = vcmp.eq.s32.totalorder %v68, %v1176
    %vm1297 = vcmp.eq.s32.totalorder %v69, %v1176
    %vm1298 = vcmp.eq.s32.totalorder %v70, %v1176
    %vm1299 = vcmp.eq.s32.totalorder %v71, %v1176
    %vm1300 = vcmp.eq.s32.totalorder %v68, %v1179
    %vm1301 = vcmp.eq.s32.totalorder %v69, %v1179
    %vm1302 = vcmp.eq.s32.totalorder %v70, %v1179
    %vm1303 = vcmp.eq.s32.totalorder %v71, %v1179
    %vm1304 = vcmp.eq.s32.totalorder %v68, %v1182
    %vm1305 = vcmp.eq.s32.totalorder %v69, %v1182
    %vm1306 = vcmp.eq.s32.totalorder %v70, %v1182
    %vm1307 = vcmp.eq.s32.totalorder %v71, %v1182
    %vm1308 = vcmp.eq.s32.totalorder %v68, %v1185
    %vm1309 = vcmp.eq.s32.totalorder %v69, %v1185
    %vm1310 = vcmp.eq.s32.totalorder %v70, %v1185
    %vm1311 = vcmp.eq.s32.totalorder %v71, %v1185
    %vm1312 = vcmp.eq.s32.totalorder %v68, %v1188
    %vm1313 = vcmp.eq.s32.totalorder %v69, %v1188
    %vm1314 = vcmp.eq.s32.totalorder %v70, %v1188
    %vm1315 = vcmp.eq.s32.totalorder %v71, %v1188
    %vm1316 = vcmp.eq.s32.totalorder %v68, %v1191
    %vm1317 = vcmp.eq.s32.totalorder %v69, %v1191
    %vm1318 = vcmp.eq.s32.totalorder %v70, %v1191
    %vm1319 = vcmp.eq.s32.totalorder %v71, %v1191
    %vm1320 = vmor %vm936, %vm1192
    %vm1321 = vmor %vm937, %vm1193
    %vm1322 = vmor %vm938, %vm1194
    %vm1323 = vmor %vm939, %vm1195
    %vm1324 = vmor %vm940, %vm1196
    %vm1325 = vmor %vm941, %vm1197
    %vm1326 = vmor %vm942, %vm1198
    %vm1327 = vmor %vm943, %vm1199
    %vm1328 = vmor %vm944, %vm1200
    %vm1329 = vmor %vm945, %vm1201
    %vm1330 = vmor %vm946, %vm1202
    %vm1331 = vmor %vm947, %vm1203
    %vm1332 = vmor %vm948, %vm1204
    %vm1333 = vmor %vm949, %vm1205
    %vm1334 = vmor %vm950, %vm1206
    %vm1335 = vmor %vm951, %vm1207
    %vm1336 = vmor %vm952, %vm1208
    %vm1337 = vmor %vm953, %vm1209
    %vm1338 = vmor %vm954, %vm1210
    %vm1339 = vmor %vm955, %vm1211
    %vm1340 = vmor %vm956, %vm1212
    %vm1341 = vmor %vm957, %vm1213
    %vm1342 = vmor %vm958, %vm1214
    %vm1343 = vmor %vm959, %vm1215
    %vm1344 = vmor %vm960, %vm1216
    %vm1345 = vmor %vm961, %vm1217
    %vm1346 = vmor %vm962, %vm1218
    %vm1347 = vmor %vm963, %vm1219
    %vm1348 = vmor %vm964, %vm1220
    %vm1349 = vmor %vm965, %vm1221
    %vm1350 = vmor %vm966, %vm1222
    %vm1351 = vmor %vm967, %vm1223
    %vm1352 = vmor %vm968, %vm1224
    %vm1353 = vmor %vm969, %vm1225
    %vm1354 = vmor %vm970, %vm1226
    %vm1355 = vmor %vm971, %vm1227
    %vm1356 = vmor %vm972, %vm1228
    %vm1357 = vmor %vm973, %vm1229
    %vm1358 = vmor %vm974, %vm1230
    %vm1359 = vmor %vm975, %vm1231
    %vm1360 = vmor %vm976, %vm1232
    %vm1361 = vmor %vm977, %vm1233
    %vm1362 = vmor %vm978, %vm1234
    %vm1363 = vmor %vm979, %vm1235
    %vm1364 = vmor %vm980, %vm1236
    %vm1365 = vmor %vm981, %vm1237
    %vm1366 = vmor %vm982, %vm1238
    %vm1367 = vmor %vm983, %vm1239
    %vm1368 = vmor %vm984, %vm1240
    %vm1369 = vmor %vm985, %vm1241
    %vm1370 = vmor %vm986, %vm1242
    %vm1371 = vmor %vm987, %vm1243
    %vm1372 = vmor %vm988, %vm1244
    %vm1373 = vmor %vm989, %vm1245
    %vm1374 = vmor %vm990, %vm1246
    %vm1375 = vmor %vm991, %vm1247
    %vm1376 = vmor %vm992, %vm1248
    %vm1377 = vmor %vm993, %vm1249
    %vm1378 = vmor %vm994, %vm1250
    %vm1379 = vmor %vm995, %vm1251
    %vm1380 = vmor %vm996, %vm1252
    %vm1381 = vmor %vm997, %vm1253
    %vm1382 = vmor %vm998, %vm1254
    %vm1383 = vmor %vm999, %vm1255
    %vm1384 = vmor %vm1000, %vm1256
    %vm1385 = vmor %vm1001, %vm1257
    %vm1386 = vmor %vm1002, %vm1258
    %vm1387 = vmor %vm1003, %vm1259
    %vm1388 = vmor %vm1004, %vm1260
    %vm1389 = vmor %vm1005, %vm1261
    %vm1390 = vmor %vm1006, %vm1262
    %vm1391 = vmor %vm1007, %vm1263
    %vm1392 = vmor %vm1008, %vm1264
    %vm1393 = vmor %vm1009, %vm1265
    %vm1394 = vmor %vm1010, %vm1266
    %vm1395 = vmor %vm1011, %vm1267
    %vm1396 = vmor %vm1012, %vm1268
    %vm1397 = vmor %vm1013, %vm1269
    %vm1398 = vmor %vm1014, %vm1270
    %vm1399 = vmor %vm1015, %vm1271
    %vm1400 = vmor %vm1016, %vm1272
    %vm1401 = vmor %vm1017, %vm1273
    %vm1402 = vmor %vm1018, %vm1274
    %vm1403 = vmor %vm1019, %vm1275
    %vm1404 = vmor %vm1020, %vm1276
    %vm1405 = vmor %vm1021, %vm1277
    %vm1406 = vmor %vm1022, %vm1278
    %vm1407 = vmor %vm1023, %vm1279
    %vm1408 = vmor %vm1024, %vm1280
    %vm1409 = vmor %vm1025, %vm1281
    %vm1410 = vmor %vm1026, %vm1282
    %vm1411 = vmor %vm1027, %vm1283
    %vm1412 = vmor %vm1028, %vm1284
    %vm1413 = vmor %vm1029, %vm1285
    %vm1414 = vmor %vm1030, %vm1286
    %vm1415 = vmor %vm1031, %vm1287
    %vm1416 = vmor %vm1032, %vm1288
    %vm1417 = vmor %vm1033, %vm1289
    %vm1418 = vmor %vm1034, %vm1290
    %vm1419 = vmor %vm1035, %vm1291
    %vm1420 = vmor %vm1036, %vm1292
    %vm1421 = vmor %vm1037, %vm1293
    %vm1422 = vmor %vm1038, %vm1294
    %vm1423 = vmor %vm1039, %vm1295
    %vm1424 = vmor %vm1040, %vm1296
    %vm1425 = vmor %vm1041, %vm1297
    %vm1426 = vmor %vm1042, %vm1298
    %vm1427 = vmor %vm1043, %vm1299
    %vm1428 = vmor %vm1044, %vm1300
    %vm1429 = vmor %vm1045, %vm1301
    %vm1430 = vmor %vm1046, %vm1302
    %vm1431 = vmor %vm1047, %vm1303
    %vm1432 = vmor %vm1048, %vm1304
    %vm1433 = vmor %vm1049, %vm1305
    %vm1434 = vmor %vm1050, %vm1306
    %vm1435 = vmor %vm1051, %vm1307
    %vm1436 = vmor %vm1052, %vm1308
    %vm1437 = vmor %vm1053, %vm1309
    %vm1438 = vmor %vm1054, %vm1310
    %vm1439 = vmor %vm1055, %vm1311
    %vm1440 = vmor %vm1056, %vm1312
    %vm1441 = vmor %vm1057, %vm1313
    %vm1442 = vmor %vm1058, %vm1314
    %vm1443 = vmor %vm1059, %vm1315
    %vm1444 = vmor %vm1060, %vm1316
    %vm1445 = vmor %vm1061, %vm1317
    %vm1446 = vmor %vm1062, %vm1318
    %vm1447 = vmor %vm1063, %vm1319
    %v1448 = vsel %vm1320, 1, 0
    %v1449 = vsel %vm1321, 1, 0
    %v1450 = vsel %vm1322, 1, 0
    %v1451 = vsel %vm1323, 1, 0
    %v1452 = vsel %vm1324, 1, 0
    %v1453 = vsel %vm1325, 1, 0
    %v1454 = vsel %vm1326, 1, 0
    %v1455 = vsel %vm1327, 1, 0
    %v1456 = vsel %vm1328, 1, 0
    %v1457 = vsel %vm1329, 1, 0
    %v1458 = vsel %vm1330, 1, 0
    %v1459 = vsel %vm1331, 1, 0
    %v1460 = vsel %vm1332, 1, 0
    %v1461 = vsel %vm1333, 1, 0
    %v1462 = vsel %vm1334, 1, 0
    %v1463 = vsel %vm1335, 1, 0
    %v1464 = vsel %vm1336, 1, 0
    %v1465 = vsel %vm1337, 1, 0
    %v1466 = vsel %vm1338, 1, 0
    %v1467 = vsel %vm1339, 1, 0
    %v1468 = vsel %vm1340, 1, 0
    %v1469 = vsel %vm1341, 1, 0
    %v1470 = vsel %vm1342, 1, 0
    %v1471 = vsel %vm1343, 1, 0
    %v1472 = vsel %vm1344, 1, 0
    %v1473 = vsel %vm1345, 1, 0
    %v1474 = vsel %vm1346, 1, 0
    %v1475 = vsel %vm1347, 1, 0
    %v1476 = vsel %vm1348, 1, 0
    %v1477 = vsel %vm1349, 1, 0
    %v1478 = vsel %vm1350, 1, 0
    %v1479 = vsel %vm1351, 1, 0
    %v1480 = vsel %vm1352, 1, 0
    %v1481 = vsel %vm1353, 1, 0
    %v1482 = vsel %vm1354, 1, 0
    %v1483 = vsel %vm1355, 1, 0
    %v1484 = vsel %vm1356, 1, 0
    %v1485 = vsel %vm1357, 1, 0
    %v1486 = vsel %vm1358, 1, 0
    %v1487 = vsel %vm1359, 1, 0
    %v1488 = vsel %vm1360, 1, 0
    %v1489 = vsel %vm1361, 1, 0
    %v1490 = vsel %vm1362, 1, 0
    %v1491 = vsel %vm1363, 1, 0
    %v1492 = vsel %vm1364, 1, 0
    %v1493 = vsel %vm1365, 1, 0
    %v1494 = vsel %vm1366, 1, 0
    %v1495 = vsel %vm1367, 1, 0
    %v1496 = vsel %vm1368, 1, 0
    %v1497 = vsel %vm1369, 1, 0
    %v1498 = vsel %vm1370, 1, 0
    %v1499 = vsel %vm1371, 1, 0
    %v1500 = vsel %vm1372, 1, 0
    %v1501 = vsel %vm1373, 1, 0
    %v1502 = vsel %vm1374, 1, 0
    %v1503 = vsel %vm1375, 1, 0
    %v1504 = vsel %vm1376, 1, 0
    %v1505 = vsel %vm1377, 1, 0
    %v1506 = vsel %vm1378, 1, 0
    %v1507 = vsel %vm1379, 1, 0
    %v1508 = vsel %vm1380, 1, 0
    %v1509 = vsel %vm1381, 1, 0
    %v1510 = vsel %vm1382, 1, 0
    %v1511 = vsel %vm1383, 1, 0
    %v1512 = vsel %vm1384, 1, 0
    %v1513 = vsel %vm1385, 1, 0
    %v1514 = vsel %vm1386, 1, 0
    %v1515 = vsel %vm1387, 1, 0
    %v1516 = vsel %vm1388, 1, 0
    %v1517 = vsel %vm1389, 1, 0
    %v1518 = vsel %vm1390, 1, 0
    %v1519 = vsel %vm1391, 1, 0
    %v1520 = vsel %vm1392, 1, 0
    %v1521 = vsel %vm1393, 1, 0
    %v1522 = vsel %vm1394, 1, 0
    %v1523 = vsel %vm1395, 1, 0
    %v1524 = vsel %vm1396, 1, 0
    %v1525 = vsel %vm1397, 1, 0
    %v1526 = vsel %vm1398, 1, 0
    %v1527 = vsel %vm1399, 1, 0
    %v1528 = vsel %vm1400, 1, 0
    %v1529 = vsel %vm1401, 1, 0
    %v1530 = vsel %vm1402, 1, 0
    %v1531 = vsel %vm1403, 1, 0
    %v1532 = vsel %vm1404, 1, 0
    %v1533 = vsel %vm1405, 1, 0
    %v1534 = vsel %vm1406, 1, 0
    %v1535 = vsel %vm1407, 1, 0
    %v1536 = vsel %vm1408, 1, 0
    %v1537 = vsel %vm1409, 1, 0
    %v1538 = vsel %vm1410, 1, 0
    %v1539 = vsel %vm1411, 1, 0
    %v1540 = vsel %vm1412, 1, 0
    %v1541 = vsel %vm1413, 1, 0
    %v1542 = vsel %vm1414, 1, 0
    %v1543 = vsel %vm1415, 1, 0
    %v1544 = vsel %vm1416, 1, 0
    %v1545 = vsel %vm1417, 1, 0
    %v1546 = vsel %vm1418, 1, 0
    %v1547 = vsel %vm1419, 1, 0
    %v1548 = vsel %vm1420, 1, 0
    %v1549 = vsel %vm1421, 1, 0
    %v1550 = vsel %vm1422, 1, 0
    %v1551 = vsel %vm1423, 1, 0
    %v1552 = vsel %vm1424, 1, 0
    %v1553 = vsel %vm1425, 1, 0
    %v1554 = vsel %vm1426, 1, 0
    %v1555 = vsel %vm1427, 1, 0
    %v1556 = vsel %vm1428, 1, 0
    %v1557 = vsel %vm1429, 1, 0
    %v1558 = vsel %vm1430, 1, 0
    %v1559 = vsel %vm1431, 1, 0
    %v1560 = vsel %vm1432, 1, 0
    %v1561 = vsel %vm1433, 1, 0
    %v1562 = vsel %vm1434, 1, 0
    %v1563 = vsel %vm1435, 1, 0
    %v1564 = vsel %vm1436, 1, 0
    %v1565 = vsel %vm1437, 1, 0
    %v1566 = vsel %vm1438, 1, 0
    %v1567 = vsel %vm1439, 1, 0
    %v1568 = vsel %vm1440, 1, 0
    %v1569 = vsel %vm1441, 1, 0
    %v1570 = vsel %vm1442, 1, 0
    %v1571 = vsel %vm1443, 1, 0
    %v1572 = vsel %vm1444, 1, 0
    %v1573 = vsel %vm1445, 1, 0
    %v1574 = vsel %vm1446, 1, 0
    %v1575 = vsel %vm1447, 1, 0
    %v1576 = vcvt.s32.f32 %v1448
    %v1577 = vcvt.s32.f32 %v1449
    %v1578 = vcvt.s32.f32 %v1450
    %v1579 = vcvt.s32.f32 %v1451
    %v1580 = vcvt.s32.f32 %v1452
    %v1581 = vcvt.s32.f32 %v1453
    %v1582 = vcvt.s32.f32 %v1454
    %v1583 = vcvt.s32.f32 %v1455
    %v1584 = vcvt.s32.f32 %v1456
    %v1585 = vcvt.s32.f32 %v1457
    %v1586 = vcvt.s32.f32 %v1458
    %v1587 = vcvt.s32.f32 %v1459
    %v1588 = vcvt.s32.f32 %v1460
    %v1589 = vcvt.s32.f32 %v1461
    %v1590 = vcvt.s32.f32 %v1462
    %v1591 = vcvt.s32.f32 %v1463
    %v1592 = vcvt.s32.f32 %v1464
    %v1593 = vcvt.s32.f32 %v1465
    %v1594 = vcvt.s32.f32 %v1466
    %v1595 = vcvt.s32.f32 %v1467
    %v1596 = vcvt.s32.f32 %v1468
    %v1597 = vcvt.s32.f32 %v1469
    %v1598 = vcvt.s32.f32 %v1470
    %v1599 = vcvt.s32.f32 %v1471
    %v1600 = vcvt.s32.f32 %v1472
    %v1601 = vcvt.s32.f32 %v1473
    %v1602 = vcvt.s32.f32 %v1474
    %v1603 = vcvt.s32.f32 %v1475
    %v1604 = vcvt.s32.f32 %v1476
    %v1605 = vcvt.s32.f32 %v1477
    %v1606 = vcvt.s32.f32 %v1478
    %v1607 = vcvt.s32.f32 %v1479
    %v1608 = vcvt.s32.f32 %v1480
    %v1609 = vcvt.s32.f32 %v1481
    %v1610 = vcvt.s32.f32 %v1482
    %v1611 = vcvt.s32.f32 %v1483
    %v1612 = vcvt.s32.f32 %v1484
    %v1613 = vcvt.s32.f32 %v1485
    %v1614 = vcvt.s32.f32 %v1486
    %v1615 = vcvt.s32.f32 %v1487
    %v1616 = vcvt.s32.f32 %v1488
    %v1617 = vcvt.s32.f32 %v1489
    %v1618 = vcvt.s32.f32 %v1490
    %v1619 = vcvt.s32.f32 %v1491
    %v1620 = vcvt.s32.f32 %v1492
    %v1621 = vcvt.s32.f32 %v1493
    %v1622 = vcvt.s32.f32 %v1494
    %v1623 = vcvt.s32.f32 %v1495
    %v1624 = vcvt.s32.f32 %v1496
    %v1625 = vcvt.s32.f32 %v1497
    %v1626 = vcvt.s32.f32 %v1498
    %v1627 = vcvt.s32.f32 %v1499
    %v1628 = vcvt.s32.f32 %v1500
    %v1629 = vcvt.s32.f32 %v1501
    %v1630 = vcvt.s32.f32 %v1502
    %v1631 = vcvt.s32.f32 %v1503
    %v1632 = vcvt.s32.f32 %v1504
    %v1633 = vcvt.s32.f32 %v1505
    %v1634 = vcvt.s32.f32 %v1506
    %v1635 = vcvt.s32.f32 %v1507
    %v1636 = vcvt.s32.f32 %v1508
    %v1637 = vcvt.s32.f32 %v1509
    %v1638 = vcvt.s32.f32 %v1510
    %v1639 = vcvt.s32.f32 %v1511
    %v1640 = vcvt.s32.f32 %v1512
    %v1641 = vcvt.s32.f32 %v1513
    %v1642 = vcvt.s32.f32 %v1514
    %v1643 = vcvt.s32.f32 %v1515
    %v1644 = vcvt.s32.f32 %v1516
    %v1645 = vcvt.s32.f32 %v1517
    %v1646 = vcvt.s32.f32 %v1518
    %v1647 = vcvt.s32.f32 %v1519
    %v1648 = vcvt.s32.f32 %v1520
    %v1649 = vcvt.s32.f32 %v1521
    %v1650 = vcvt.s32.f32 %v1522
    %v1651 = vcvt.s32.f32 %v1523
    %v1652 = vcvt.s32.f32 %v1524
    %v1653 = vcvt.s32.f32 %v1525
    %v1654 = vcvt.s32.f32 %v1526
    %v1655 = vcvt.s32.f32 %v1527
    %v1656 = vcvt.s32.f32 %v1528
    %v1657 = vcvt.s32.f32 %v1529
    %v1658 = vcvt.s32.f32 %v1530
    %v1659 = vcvt.s32.f32 %v1531
    %v1660 = vcvt.s32.f32 %v1532
    %v1661 = vcvt.s32.f32 %v1533
    %v1662 = vcvt.s32.f32 %v1534
    %v1663 = vcvt.s32.f32 %v1535
    %v1664 = vcvt.s32.f32 %v1536
    %v1665 = vcvt.s32.f32 %v1537
    %v1666 = vcvt.s32.f32 %v1538
    %v1667 = vcvt.s32.f32 %v1539
    %v1668 = vcvt.s32.f32 %v1540
    %v1669 = vcvt.s32.f32 %v1541
    %v1670 = vcvt.s32.f32 %v1542
    %v1671 = vcvt.s32.f32 %v1543
    %v1672 = vcvt.s32.f32 %v1544
    %v1673 = vcvt.s32.f32 %v1545
    %v1674 = vcvt.s32.f32 %v1546
    %v1675 = vcvt.s32.f32 %v1547
    %v1676 = vcvt.s32.f32 %v1548
    %v1677 = vcvt.s32.f32 %v1549
    %v1678 = vcvt.s32.f32 %v1550
    %v1679 = vcvt.s32.f32 %v1551
    %v1680 = vcvt.s32.f32 %v1552
    %v1681 = vcvt.s32.f32 %v1553
    %v1682 = vcvt.s32.f32 %v1554
    %v1683 = vcvt.s32.f32 %v1555
    %v1684 = vcvt.s32.f32 %v1556
    %v1685 = vcvt.s32.f32 %v1557
    %v1686 = vcvt.s32.f32 %v1558
    %v1687 = vcvt.s32.f32 %v1559
    %v1688 = vcvt.s32.f32 %v1560
    %v1689 = vcvt.s32.f32 %v1561
    %v1690 = vcvt.s32.f32 %v1562
    %v1691 = vcvt.s32.f32 %v1563
    %v1692 = vcvt.s32.f32 %v1564
    %v1693 = vcvt.s32.f32 %v1565
    %v1694 = vcvt.s32.f32 %v1566
    %v1695 = vcvt.s32.f32 %v1567
    %v1696 = vcvt.s32.f32 %v1568
    %v1697 = vcvt.s32.f32 %v1569
    %v1698 = vcvt.s32.f32 %v1570
    %v1699 = vcvt.s32.f32 %v1571
    %v1700 = vcvt.s32.f32 %v1572
    %v1701 = vcvt.s32.f32 %v1573
    %v1702 = vcvt.s32.f32 %v1574
    %v1703 = vcvt.s32.f32 %v1575
    %v1704 = vpack.c.bf16 %v1580, %v1576
    %v1705 = vpack.c.bf16 %v1581, %v1577
    %v1706 = vpack.c.bf16 %v1582, %v1578
    %v1707 = vpack.c.bf16 %v1583, %v1579
    %v1708 = vpack.c.bf16 %v1588, %v1584
    %v1709 = vpack.c.bf16 %v1589, %v1585
    %v1710 = vpack.c.bf16 %v1590, %v1586
    %v1711 = vpack.c.bf16 %v1591, %v1587
    %v1712 = vpack.c.bf16 %v1596, %v1592
    %v1713 = vpack.c.bf16 %v1597, %v1593
    %v1714 = vpack.c.bf16 %v1598, %v1594
    %v1715 = vpack.c.bf16 %v1599, %v1595
    %v1716 = vpack.c.bf16 %v1604, %v1600
    %v1717 = vpack.c.bf16 %v1605, %v1601
    %v1718 = vpack.c.bf16 %v1606, %v1602
    %v1719 = vpack.c.bf16 %v1607, %v1603
    %v1720 = vpack.c.bf16 %v1612, %v1608
    %v1721 = vpack.c.bf16 %v1613, %v1609
    %v1722 = vpack.c.bf16 %v1614, %v1610
    %v1723 = vpack.c.bf16 %v1615, %v1611
    %v1724 = vpack.c.bf16 %v1620, %v1616
    %v1725 = vpack.c.bf16 %v1621, %v1617
    %v1726 = vpack.c.bf16 %v1622, %v1618
    %v1727 = vpack.c.bf16 %v1623, %v1619
    %v1728 = vpack.c.bf16 %v1628, %v1624
    %v1729 = vpack.c.bf16 %v1629, %v1625
    %v1730 = vpack.c.bf16 %v1630, %v1626
    %v1731 = vpack.c.bf16 %v1631, %v1627
    %v1732 = vpack.c.bf16 %v1636, %v1632
    %v1733 = vpack.c.bf16 %v1637, %v1633
    %v1734 = vpack.c.bf16 %v1638, %v1634
    %v1735 = vpack.c.bf16 %v1639, %v1635
    %v1736 = vpack.c.bf16 %v1644, %v1640
    %v1737 = vpack.c.bf16 %v1645, %v1641
    %v1738 = vpack.c.bf16 %v1646, %v1642
    %v1739 = vpack.c.bf16 %v1647, %v1643
    %v1740 = vpack.c.bf16 %v1652, %v1648
    %v1741 = vpack.c.bf16 %v1653, %v1649
    %v1742 = vpack.c.bf16 %v1654, %v1650
    %v1743 = vpack.c.bf16 %v1655, %v1651
    %v1744 = vpack.c.bf16 %v1660, %v1656
    %v1745 = vpack.c.bf16 %v1661, %v1657
    %v1746 = vpack.c.bf16 %v1662, %v1658
    %v1747 = vpack.c.bf16 %v1663, %v1659
    %v1748 = vpack.c.bf16 %v1668, %v1664
    %v1749 = vpack.c.bf16 %v1669, %v1665
    %v1750 = vpack.c.bf16 %v1670, %v1666
    %v1751 = vpack.c.bf16 %v1671, %v1667
    %v1752 = vpack.c.bf16 %v1676, %v1672
    %v1753 = vpack.c.bf16 %v1677, %v1673
    %v1754 = vpack.c.bf16 %v1678, %v1674
    %v1755 = vpack.c.bf16 %v1679, %v1675
    %v1756 = vpack.c.bf16 %v1684, %v1680
    %v1757 = vpack.c.bf16 %v1685, %v1681
    %v1758 = vpack.c.bf16 %v1686, %v1682
    %v1759 = vpack.c.bf16 %v1687, %v1683
    %v1760 = vpack.c.bf16 %v1692, %v1688
    %v1761 = vpack.c.bf16 %v1693, %v1689
    %v1762 = vpack.c.bf16 %v1694, %v1690
    %v1763 = vpack.c.bf16 %v1695, %v1691
    %v1764 = vpack.c.bf16 %v1700, %v1696
    %v1765 = vpack.c.bf16 %v1701, %v1697
    %v1766 = vpack.c.bf16 %v1702, %v1698
    %v1767 = vpack.c.bf16 %v1703, %v1699
    %v1768 = vld [vmem:[%s1] sm:$0xf]
    %v1769 = vld [vmem:[%s1 + $0x4] sm:$0xf]
    %v1770 = vld [vmem:[%s1 + $0x8] sm:$0xf]
    %v1771 = vld [vmem:[%s1 + $0xc] sm:$0xf]
    %v1772 = vld [vmem:[%s1 + $0x10] sm:$0xf]
    %v1773 = vld [vmem:[%s1 + $0x14] sm:$0xf]
    %v1774 = vld [vmem:[%s1 + $0x18] sm:$0xf]
    %v1775 = vld [vmem:[%s1 + $0x1c] sm:$0xf]
    %v1776 = vld [vmem:[%s1 + $0x20] sm:$0xf]
    %v1777 = vld [vmem:[%s1 + $0x24] sm:$0xf]
    %v1778 = vld [vmem:[%s1 + $0x28] sm:$0xf]
    %v1779 = vld [vmem:[%s1 + $0x2c] sm:$0xf]
    %v1780 = vld [vmem:[%s1 + $0x30] sm:$0xf]
    %v1781 = vld [vmem:[%s1 + $0x34] sm:$0xf]
    %v1782 = vld [vmem:[%s1 + $0x38] sm:$0xf]
    %v1783 = vld [vmem:[%s1 + $0x3c] sm:$0xf]
    %v1784 = vld [vmem:[%s1 + $0x40] sm:$0xf]
    %v1785 = vld [vmem:[%s1 + $0x44] sm:$0xf]
    %v1786 = vld [vmem:[%s1 + $0x48] sm:$0xf]
    %v1787 = vld [vmem:[%s1 + $0x4c] sm:$0xf]
    %v1788 = vld [vmem:[%s1 + $0x50] sm:$0xf]
    %v1789 = vld [vmem:[%s1 + $0x54] sm:$0xf]
    %v1790 = vld [vmem:[%s1 + $0x58] sm:$0xf]
    %v1791 = vld [vmem:[%s1 + $0x5c] sm:$0xf]
    %v1792 = vld [vmem:[%s1 + $0x60] sm:$0xf]
    %v1793 = vld [vmem:[%s1 + $0x64] sm:$0xf]
    %v1794 = vld [vmem:[%s1 + $0x68] sm:$0xf]
    %v1795 = vld [vmem:[%s1 + $0x6c] sm:$0xf]
    %v1796 = vld [vmem:[%s1 + $0x70] sm:$0xf]
    %v1797 = vld [vmem:[%s1 + $0x74] sm:$0xf]
    %v1798 = vld [vmem:[%s1 + $0x78] sm:$0xf]
    %v1799 = vld [vmem:[%s1 + $0x7c] sm:$0xf]
    %v1800 = vld [vmem:[%s1 + $0x80] sm:$0xf]
    %v1801 = vld [vmem:[%s1 + $0x84] sm:$0xf]
    %v1802 = vld [vmem:[%s1 + $0x88] sm:$0xf]
    %v1803 = vld [vmem:[%s1 + $0x8c] sm:$0xf]
    %v1804 = vld [vmem:[%s1 + $0x90] sm:$0xf]
    %v1805 = vld [vmem:[%s1 + $0x94] sm:$0xf]
    %v1806 = vld [vmem:[%s1 + $0x98] sm:$0xf]
    %v1807 = vld [vmem:[%s1 + $0x9c] sm:$0xf]
    %v1808 = vld [vmem:[%s1 + $0xa0] sm:$0xf]
    %v1809 = vld [vmem:[%s1 + $0xa4] sm:$0xf]
    %v1810 = vld [vmem:[%s1 + $0xa8] sm:$0xf]
    %v1811 = vld [vmem:[%s1 + $0xac] sm:$0xf]
    %v1812 = vld [vmem:[%s1 + $0xb0] sm:$0xf]
    %v1813 = vld [vmem:[%s1 + $0xb4] sm:$0xf]
    %v1814 = vld [vmem:[%s1 + $0xb8] sm:$0xf]
    %v1815 = vld [vmem:[%s1 + $0xbc] sm:$0xf]
    %v1816 = vld [vmem:[%s1 + $0xc0] sm:$0xf]
    %v1817 = vld [vmem:[%s1 + $0xc4] sm:$0xf]
    %v1818 = vld [vmem:[%s1 + $0xc8] sm:$0xf]
    %v1819 = vld [vmem:[%s1 + $0xcc] sm:$0xf]
    %v1820 = vld [vmem:[%s1 + $0xd0] sm:$0xf]
    %v1821 = vld [vmem:[%s1 + $0xd4] sm:$0xf]
    %v1822 = vld [vmem:[%s1 + $0xd8] sm:$0xf]
    %v1823 = vld [vmem:[%s1 + $0xdc] sm:$0xf]
    %v1824 = vld [vmem:[%s1 + $0xe0] sm:$0xf]
    %v1825 = vld [vmem:[%s1 + $0xe4] sm:$0xf]
    %v1826 = vld [vmem:[%s1 + $0xe8] sm:$0xf]
    %v1827 = vld [vmem:[%s1 + $0xec] sm:$0xf]
    %v1828 = vld [vmem:[%s1 + $0xf0] sm:$0xf]
    %v1829 = vld [vmem:[%s1 + $0xf4] sm:$0xf]
    %v1830 = vld [vmem:[%s1 + $0xf8] sm:$0xf]
    %v1831 = vld [vmem:[%s1 + $0xfc] sm:$0xf]
    %v1832 = vld [vmem:[%s2] sm:$0x1]
    %v1834 = vlaneseq
    %v1835 = vshrl.u32 %v1834, 7
    %v1836 = vsub.s32 0, %v1835
    %v1837 = vrot.slane %v1832, %v1836
    %v1903 = vunpack.c.l.b16 %v1768
    %v1904 = vunpack.c.l.b16 %v1769
    %v1905 = vunpack.c.l.b16 %v1770
    %v1906 = vunpack.c.l.b16 %v1771
    %v1907 = vunpack.c.l.b16 %v1772
    %v1908 = vunpack.c.l.b16 %v1773
    %v1909 = vunpack.c.l.b16 %v1774
    %v1910 = vunpack.c.l.b16 %v1775
    %v1911 = vunpack.c.l.b16 %v1776
    %v1912 = vunpack.c.l.b16 %v1777
    %v1913 = vunpack.c.l.b16 %v1778
    %v1914 = vunpack.c.l.b16 %v1779
    %v1915 = vunpack.c.l.b16 %v1780
    %v1916 = vunpack.c.l.b16 %v1781
    %v1917 = vunpack.c.l.b16 %v1782
    %v1918 = vunpack.c.l.b16 %v1783
    %v1919 = vunpack.c.l.b16 %v1784
    %v1920 = vunpack.c.l.b16 %v1785
    %v1921 = vunpack.c.l.b16 %v1786
    %v1922 = vunpack.c.l.b16 %v1787
    %v1923 = vunpack.c.l.b16 %v1788
    %v1924 = vunpack.c.l.b16 %v1789
    %v1925 = vunpack.c.l.b16 %v1790
    %v1926 = vunpack.c.l.b16 %v1791
    %v1927 = vunpack.c.l.b16 %v1792
    %v1928 = vunpack.c.l.b16 %v1793
    %v1929 = vunpack.c.l.b16 %v1794
    %v1930 = vunpack.c.l.b16 %v1795
    %v1931 = vunpack.c.l.b16 %v1796
    %v1932 = vunpack.c.l.b16 %v1797
    %v1933 = vunpack.c.l.b16 %v1798
    %v1934 = vunpack.c.l.b16 %v1799
    %v1935 = vunpack.c.l.b16 %v1800
    %v1936 = vunpack.c.l.b16 %v1801
    %v1937 = vunpack.c.l.b16 %v1802
    %v1938 = vunpack.c.l.b16 %v1803
    %v1939 = vunpack.c.l.b16 %v1804
    %v1940 = vunpack.c.l.b16 %v1805
    %v1941 = vunpack.c.l.b16 %v1806
    %v1942 = vunpack.c.l.b16 %v1807
    %v1943 = vunpack.c.l.b16 %v1808
    %v1944 = vunpack.c.l.b16 %v1809
    %v1945 = vunpack.c.l.b16 %v1810
    %v1946 = vunpack.c.l.b16 %v1811
    %v1947 = vunpack.c.l.b16 %v1812
    %v1948 = vunpack.c.l.b16 %v1813
    %v1949 = vunpack.c.l.b16 %v1814
    %v1950 = vunpack.c.l.b16 %v1815
    %v1951 = vunpack.c.l.b16 %v1816
    %v1952 = vunpack.c.l.b16 %v1817
    %v1953 = vunpack.c.l.b16 %v1818
    %v1954 = vunpack.c.l.b16 %v1819
    %v1955 = vunpack.c.l.b16 %v1820
    %v1956 = vunpack.c.l.b16 %v1821
    %v1957 = vunpack.c.l.b16 %v1822
    %v1958 = vunpack.c.l.b16 %v1823
    %v1959 = vunpack.c.l.b16 %v1824
    %v1960 = vunpack.c.l.b16 %v1825
    %v1961 = vunpack.c.l.b16 %v1826
    %v1962 = vunpack.c.l.b16 %v1827
    %v1963 = vunpack.c.l.b16 %v1828
    %v1964 = vunpack.c.l.b16 %v1829
    %v1965 = vunpack.c.l.b16 %v1830
    %v1966 = vunpack.c.l.b16 %v1831
    %v1967 = vpack.c.b16 %v1904, %v1903
    %v1968 = vpack.c.b16 %v1906, %v1905
    %v1969 = vpack.c.b16 %v1908, %v1907
    %v1970 = vpack.c.b16 %v1910, %v1909
    %v1971 = vpack.c.b16 %v1912, %v1911
    %v1972 = vpack.c.b16 %v1914, %v1913
    %v1973 = vpack.c.b16 %v1916, %v1915
    %v1974 = vpack.c.b16 %v1918, %v1917
    %v1975 = vpack.c.b16 %v1920, %v1919
    %v1976 = vpack.c.b16 %v1922, %v1921
    %v1977 = vpack.c.b16 %v1924, %v1923
    %v1978 = vpack.c.b16 %v1926, %v1925
    %v1979 = vpack.c.b16 %v1928, %v1927
    %v1980 = vpack.c.b16 %v1930, %v1929
    %v1981 = vpack.c.b16 %v1932, %v1931
    %v1982 = vpack.c.b16 %v1934, %v1933
    %v1983 = vpack.c.b16 %v1936, %v1935
    %v1984 = vpack.c.b16 %v1938, %v1937
    %v1985 = vpack.c.b16 %v1940, %v1939
    %v1986 = vpack.c.b16 %v1942, %v1941
    %v1987 = vpack.c.b16 %v1944, %v1943
    %v1988 = vpack.c.b16 %v1946, %v1945
    %v1989 = vpack.c.b16 %v1948, %v1947
    %v1990 = vpack.c.b16 %v1950, %v1949
    %v1991 = vpack.c.b16 %v1952, %v1951
    %v1992 = vpack.c.b16 %v1954, %v1953
    %v1993 = vpack.c.b16 %v1956, %v1955
    %v1994 = vpack.c.b16 %v1958, %v1957
    %v1995 = vpack.c.b16 %v1960, %v1959
    %v1996 = vpack.c.b16 %v1962, %v1961
    %v1997 = vpack.c.b16 %v1964, %v1963
    %v1998 = vpack.c.b16 %v1966, %v1965
    %2031 = vmatprep.subr.bf16.mxu0 0
    %2032 = vmatpush1.bf16.msra.mxu0 %v1967
    %2033 = vmatprep.subr.bf16.mxu0 0
    %2034 = vmatpush1.bf16.msra.mxu0 %v1968
    %2035 = vmatprep.subr.bf16.mxu0 0
    %2036 = vmatpush1.bf16.msra.mxu0 %v1969
    %2037 = vmatprep.subr.bf16.mxu0 0
    %2038 = vmatpush1.bf16.msra.mxu0 %v1970
    %2039 = vmatprep.subr.bf16.mxu0 0
    %2040 = vmatpush1.bf16.msra.mxu0 %v1971
    %2041 = vmatprep.subr.bf16.mxu0 0
    %2042 = vmatpush1.bf16.msra.mxu0 %v1972
    %2043 = vmatprep.subr.bf16.mxu0 0
    %2044 = vmatpush1.bf16.msra.mxu0 %v1973
    %2045 = vmatprep.subr.bf16.mxu0 0
    %2046 = vmatpush1.bf16.msra.mxu0 %v1974
    %2047 = vmatprep.subr.bf16.mxu0 0
    %2048 = vmatpush1.bf16.msra.mxu0 %v1975
    %2049 = vmatprep.subr.bf16.mxu0 0
    %2050 = vmatpush1.bf16.msra.mxu0 %v1976
    %2051 = vmatprep.subr.bf16.mxu0 0
    %2052 = vmatpush1.bf16.msra.mxu0 %v1977
    %2053 = vmatprep.subr.bf16.mxu0 0
    %2054 = vmatpush1.bf16.msra.mxu0 %v1978
    %2055 = vmatprep.subr.bf16.mxu0 0
    %2056 = vmatpush1.bf16.msra.mxu0 %v1979
    %2057 = vmatprep.subr.bf16.mxu0 0
    %2058 = vmatpush1.bf16.msra.mxu0 %v1980
    %2059 = vmatprep.subr.bf16.mxu0 0
    %2060 = vmatpush1.bf16.msra.mxu0 %v1981
    %2061 = vmatprep.subr.bf16.mxu0 0
    %2062 = vmatpush1.bf16.msra.mxu0 %v1982
    %2063 = vmatprep.mubr.bf16.mxu0 %v1705
    %2064 = vmatmul.mubr.bf16.gmra.mrb[0].mxu0 %v1704
    %v2065 = vpop.f32.mrb[0].mxu0
    %v2066 = vadd.f32 %v1837, %v2065
    %v2067 = vpop.f32.mrb[0].mxu0
    %v2068 = vpop.f32.mrb[0].mxu0
    %v2069 = vadd.f32 %v1837, %v2068
    %v2070 = vpop.f32.mrb[0].mxu0
    %2071 = vmatprep.mubr.bf16.mxu0 %v1709
    %2072 = vmatmul.mubr.bf16.gmra.mrb[0].mxu0 %v1708
    %v2073 = vpop.f32.mrb[0].mxu0
    %v2074 = vadd.f32 %v1837, %v2073
    %v2075 = vpop.f32.mrb[0].mxu0
    %v2076 = vpop.f32.mrb[0].mxu0
    %v2077 = vadd.f32 %v1837, %v2076
    %v2078 = vpop.f32.mrb[0].mxu0
    %2079 = vmatprep.mubr.bf16.mxu0 %v1713
    %2080 = vmatmul.mubr.bf16.gmra.mrb[0].mxu0 %v1712
    %v2081 = vpop.f32.mrb[0].mxu0
    %v2082 = vadd.f32 %v1837, %v2081
    %v2083 = vpop.f32.mrb[0].mxu0
    %v2084 = vpop.f32.mrb[0].mxu0
    %v2085 = vadd.f32 %v1837, %v2084
    %v2086 = vpop.f32.mrb[0].mxu0
    %2087 = vmatprep.mubr.bf16.mxu0 %v1717
    %2088 = vmatmul.mubr.bf16.gmra.mrb[0].mxu0 %v1716
    %v2089 = vpop.f32.mrb[0].mxu0
    %v2090 = vadd.f32 %v1837, %v2089
    %v2091 = vpop.f32.mrb[0].mxu0
    %v2092 = vpop.f32.mrb[0].mxu0
    %v2093 = vadd.f32 %v1837, %v2092
    %v2094 = vpop.f32.mrb[0].mxu0
    %2095 = vmatprep.mubr.bf16.mxu0 %v1721
    %2096 = vmatmul.mubr.bf16.gmra.mrb[0].mxu0 %v1720
    %v2097 = vpop.f32.mrb[0].mxu0
    %v2098 = vadd.f32 %v1837, %v2097
    %v2099 = vpop.f32.mrb[0].mxu0
    %v2100 = vpop.f32.mrb[0].mxu0
    %v2101 = vadd.f32 %v1837, %v2100
    %v2102 = vpop.f32.mrb[0].mxu0
    %2103 = vmatprep.mubr.bf16.mxu0 %v1725
    %2104 = vmatmul.mubr.bf16.gmra.mrb[0].mxu0 %v1724
    %v2105 = vpop.f32.mrb[0].mxu0
    %v2106 = vadd.f32 %v1837, %v2105
    %v2107 = vpop.f32.mrb[0].mxu0
    %v2108 = vpop.f32.mrb[0].mxu0
    %v2109 = vadd.f32 %v1837, %v2108
    %v2110 = vpop.f32.mrb[0].mxu0
    %2111 = vmatprep.mubr.bf16.mxu0 %v1729
    %2112 = vmatmul.mubr.bf16.gmra.mrb[0].mxu0 %v1728
    %v2113 = vpop.f32.mrb[0].mxu0
    %v2114 = vadd.f32 %v1837, %v2113
    %v2115 = vpop.f32.mrb[0].mxu0
    %v2116 = vpop.f32.mrb[0].mxu0
    %v2117 = vadd.f32 %v1837, %v2116
    %v2118 = vpop.f32.mrb[0].mxu0
    %2119 = vmatprep.mubr.bf16.mxu0 %v1733
    %2120 = vmatmul.mubr.bf16.gmra.mrb[0].mxu0 %v1732
    %v2121 = vpop.f32.mrb[0].mxu0
    %v2122 = vadd.f32 %v1837, %v2121
    %v2123 = vpop.f32.mrb[0].mxu0
    %v2124 = vpop.f32.mrb[0].mxu0
    %v2125 = vadd.f32 %v1837, %v2124
    %v2126 = vpop.f32.mrb[0].mxu0
    %2127 = vmatprep.mubr.bf16.mxu0 %v1737
    %2128 = vmatmul.mubr.bf16.gmra.mrb[0].mxu0 %v1736
    %v2129 = vpop.f32.mrb[0].mxu0
    %v2130 = vadd.f32 %v1837, %v2129
    %v2131 = vpop.f32.mrb[0].mxu0
    %v2132 = vpop.f32.mrb[0].mxu0
    %v2133 = vadd.f32 %v1837, %v2132
    %v2134 = vpop.f32.mrb[0].mxu0
    %2135 = vmatprep.mubr.bf16.mxu0 %v1741
    %2136 = vmatmul.mubr.bf16.gmra.mrb[0].mxu0 %v1740
    %v2137 = vpop.f32.mrb[0].mxu0
    %v2138 = vadd.f32 %v1837, %v2137
    %v2139 = vpop.f32.mrb[0].mxu0
    %v2140 = vpop.f32.mrb[0].mxu0
    %v2141 = vadd.f32 %v1837, %v2140
    %v2142 = vpop.f32.mrb[0].mxu0
    %2143 = vmatprep.mubr.bf16.mxu0 %v1745
    %2144 = vmatmul.mubr.bf16.gmra.mrb[0].mxu0 %v1744
    %v2145 = vpop.f32.mrb[0].mxu0
    %v2146 = vadd.f32 %v1837, %v2145
    %v2147 = vpop.f32.mrb[0].mxu0
    %v2148 = vpop.f32.mrb[0].mxu0
    %v2149 = vadd.f32 %v1837, %v2148
    %v2150 = vpop.f32.mrb[0].mxu0
    %2151 = vmatprep.mubr.bf16.mxu0 %v1749
    %2152 = vmatmul.mubr.bf16.gmra.mrb[0].mxu0 %v1748
    %v2153 = vpop.f32.mrb[0].mxu0
    %v2154 = vadd.f32 %v1837, %v2153
    %v2155 = vpop.f32.mrb[0].mxu0
    %v2156 = vpop.f32.mrb[0].mxu0
    %v2157 = vadd.f32 %v1837, %v2156
    %v2158 = vpop.f32.mrb[0].mxu0
    %2159 = vmatprep.mubr.bf16.mxu0 %v1753
    %2160 = vmatmul.mubr.bf16.gmra.mrb[0].mxu0 %v1752
    %v2161 = vpop.f32.mrb[0].mxu0
    %v2162 = vadd.f32 %v1837, %v2161
    %v2163 = vpop.f32.mrb[0].mxu0
    %v2164 = vpop.f32.mrb[0].mxu0
    %v2165 = vadd.f32 %v1837, %v2164
    %v2166 = vpop.f32.mrb[0].mxu0
    %2167 = vmatprep.mubr.bf16.mxu0 %v1757
    %2168 = vmatmul.mubr.bf16.gmra.mrb[0].mxu0 %v1756
    %v2169 = vpop.f32.mrb[0].mxu0
    %v2170 = vadd.f32 %v1837, %v2169
    %v2171 = vpop.f32.mrb[0].mxu0
    %v2172 = vpop.f32.mrb[0].mxu0
    %v2173 = vadd.f32 %v1837, %v2172
    %v2174 = vpop.f32.mrb[0].mxu0
    %2175 = vmatprep.mubr.bf16.mxu0 %v1761
    %2176 = vmatmul.mubr.bf16.gmra.mrb[0].mxu0 %v1760
    %v2177 = vpop.f32.mrb[0].mxu0
    %v2178 = vadd.f32 %v1837, %v2177
    %v2179 = vpop.f32.mrb[0].mxu0
    %v2180 = vpop.f32.mrb[0].mxu0
    %v2181 = vadd.f32 %v1837, %v2180
    %v2182 = vpop.f32.mrb[0].mxu0
    %2183 = vmatprep.mubr.bf16.mxu0 %v1765
    %2184 = vmatmul.mubr.bf16.gmra.mrb[0].mxu0 %v1764
    %v2185 = vpop.f32.mrb[0].mxu0
    %v2186 = vadd.f32 %v1837, %v2185
    %v2187 = vpop.f32.mrb[0].mxu0
    %v2188 = vpop.f32.mrb[0].mxu0
    %v2189 = vadd.f32 %v1837, %v2188
    %v2190 = vpop.f32.mrb[0].mxu0
    %2191 = vdwg.mxu0
    %2192 = vmatprep.subr.bf16.mxu0 0
    %2193 = vmatpush1.bf16.msra.mxu0 %v1983
    %2194 = vmatprep.subr.bf16.mxu0 0
    %2195 = vmatpush1.bf16.msra.mxu0 %v1984
    %2196 = vmatprep.subr.bf16.mxu0 0
    %2197 = vmatpush1.bf16.msra.mxu0 %v1985
    %2198 = vmatprep.subr.bf16.mxu0 0
    %2199 = vmatpush1.bf16.msra.mxu0 %v1986
    %2200 = vmatprep.subr.bf16.mxu0 0
    %2201 = vmatpush1.bf16.msra.mxu0 %v1987
    %2202 = vmatprep.subr.bf16.mxu0 0
    %2203 = vmatpush1.bf16.msra.mxu0 %v1988
    %2204 = vmatprep.subr.bf16.mxu0 0
    %2205 = vmatpush1.bf16.msra.mxu0 %v1989
    %2206 = vmatprep.subr.bf16.mxu0 0
    %2207 = vmatpush1.bf16.msra.mxu0 %v1990
    %2208 = vmatprep.subr.bf16.mxu0 0
    %2209 = vmatpush1.bf16.msra.mxu0 %v1991
    %2210 = vmatprep.subr.bf16.mxu0 0
    %2211 = vmatpush1.bf16.msra.mxu0 %v1992
    %2212 = vmatprep.subr.bf16.mxu0 0
    %2213 = vmatpush1.bf16.msra.mxu0 %v1993
    %2214 = vmatprep.subr.bf16.mxu0 0
    %2215 = vmatpush1.bf16.msra.mxu0 %v1994
    %2216 = vmatprep.subr.bf16.mxu0 0
    %2217 = vmatpush1.bf16.msra.mxu0 %v1995
    %2218 = vmatprep.subr.bf16.mxu0 0
    %2219 = vmatpush1.bf16.msra.mxu0 %v1996
    %2220 = vmatprep.subr.bf16.mxu0 0
    %2221 = vmatpush1.bf16.msra.mxu0 %v1997
    %2222 = vmatprep.subr.bf16.mxu0 0
    %2223 = vmatpush1.bf16.msra.mxu0 %v1998
    %2224 = vmatprep.mubr.bf16.mxu0 %v1707
    %2225 = vmatmul.mubr.bf16.gmra.mrb[0].mxu0 %v1706
    %v2226 = vpop.f32.mrb[0].mxu0
    %v2227 = vadd.f32 %v2066, %v2226
    %v2228 = vpop.f32.mrb[0].mxu0
    %v2229 = vpop.f32.mrb[0].mxu0
    %v2230 = vadd.f32 %v2069, %v2229
    %v2231 = vpop.f32.mrb[0].mxu0
    %2232 = vmatprep.mubr.bf16.mxu0 %v1711
    %2233 = vmatmul.mubr.bf16.gmra.mrb[0].mxu0 %v1710
    %v2234 = vpop.f32.mrb[0].mxu0
    %v2235 = vadd.f32 %v2074, %v2234
    %v2236 = vpop.f32.mrb[0].mxu0
    %v2237 = vpop.f32.mrb[0].mxu0
    %v2238 = vadd.f32 %v2077, %v2237
    %v2239 = vpop.f32.mrb[0].mxu0
    %2240 = vmatprep.mubr.bf16.mxu0 %v1715
    %2241 = vmatmul.mubr.bf16.gmra.mrb[0].mxu0 %v1714
    %v2242 = vpop.f32.mrb[0].mxu0
    %v2243 = vadd.f32 %v2082, %v2242
    %v2244 = vpop.f32.mrb[0].mxu0
    %v2245 = vpop.f32.mrb[0].mxu0
    %v2246 = vadd.f32 %v2085, %v2245
    %v2247 = vpop.f32.mrb[0].mxu0
    %2248 = vmatprep.mubr.bf16.mxu0 %v1719
    %2249 = vmatmul.mubr.bf16.gmra.mrb[0].mxu0 %v1718
    %v2250 = vpop.f32.mrb[0].mxu0
    %v2251 = vadd.f32 %v2090, %v2250
    %v2252 = vpop.f32.mrb[0].mxu0
    %v2253 = vpop.f32.mrb[0].mxu0
    %v2254 = vadd.f32 %v2093, %v2253
    %v2255 = vpop.f32.mrb[0].mxu0
    %2256 = vmatprep.mubr.bf16.mxu0 %v1723
    %2257 = vmatmul.mubr.bf16.gmra.mrb[0].mxu0 %v1722
    %v2258 = vpop.f32.mrb[0].mxu0
    %v2259 = vadd.f32 %v2098, %v2258
    %v2260 = vpop.f32.mrb[0].mxu0
    %v2261 = vpop.f32.mrb[0].mxu0
    %v2262 = vadd.f32 %v2101, %v2261
    %v2263 = vpop.f32.mrb[0].mxu0
    %2264 = vmatprep.mubr.bf16.mxu0 %v1727
    %2265 = vmatmul.mubr.bf16.gmra.mrb[0].mxu0 %v1726
    %v2266 = vpop.f32.mrb[0].mxu0
    %v2267 = vadd.f32 %v2106, %v2266
    %v2268 = vpop.f32.mrb[0].mxu0
    %v2269 = vpop.f32.mrb[0].mxu0
    %v2270 = vadd.f32 %v2109, %v2269
    %v2271 = vpop.f32.mrb[0].mxu0
    %2272 = vmatprep.mubr.bf16.mxu0 %v1731
    %2273 = vmatmul.mubr.bf16.gmra.mrb[0].mxu0 %v1730
    %v2274 = vpop.f32.mrb[0].mxu0
    %v2275 = vadd.f32 %v2114, %v2274
    %v2276 = vpop.f32.mrb[0].mxu0
    %v2277 = vpop.f32.mrb[0].mxu0
    %v2278 = vadd.f32 %v2117, %v2277
    %v2279 = vpop.f32.mrb[0].mxu0
    %2280 = vmatprep.mubr.bf16.mxu0 %v1735
    %2281 = vmatmul.mubr.bf16.gmra.mrb[0].mxu0 %v1734
    %v2282 = vpop.f32.mrb[0].mxu0
    %v2283 = vadd.f32 %v2122, %v2282
    %v2284 = vpop.f32.mrb[0].mxu0
    %v2285 = vpop.f32.mrb[0].mxu0
    %v2286 = vadd.f32 %v2125, %v2285
    %v2287 = vpop.f32.mrb[0].mxu0
    %2288 = vmatprep.mubr.bf16.mxu0 %v1739
    %2289 = vmatmul.mubr.bf16.gmra.mrb[0].mxu0 %v1738
    %v2290 = vpop.f32.mrb[0].mxu0
    %v2291 = vadd.f32 %v2130, %v2290
    %v2292 = vpop.f32.mrb[0].mxu0
    %v2293 = vpop.f32.mrb[0].mxu0
    %v2294 = vadd.f32 %v2133, %v2293
    %v2295 = vpop.f32.mrb[0].mxu0
    %2296 = vmatprep.mubr.bf16.mxu0 %v1743
    %2297 = vmatmul.mubr.bf16.gmra.mrb[0].mxu0 %v1742
    %v2298 = vpop.f32.mrb[0].mxu0
    %v2299 = vadd.f32 %v2138, %v2298
    %v2300 = vpop.f32.mrb[0].mxu0
    %v2301 = vpop.f32.mrb[0].mxu0
    %v2302 = vadd.f32 %v2141, %v2301
    %v2303 = vpop.f32.mrb[0].mxu0
    %2304 = vmatprep.mubr.bf16.mxu0 %v1747
    %2305 = vmatmul.mubr.bf16.gmra.mrb[0].mxu0 %v1746
    %v2306 = vpop.f32.mrb[0].mxu0
    %v2307 = vadd.f32 %v2146, %v2306
    %v2308 = vpop.f32.mrb[0].mxu0
    %v2309 = vpop.f32.mrb[0].mxu0
    %v2310 = vadd.f32 %v2149, %v2309
    %v2311 = vpop.f32.mrb[0].mxu0
    %2312 = vmatprep.mubr.bf16.mxu0 %v1751
    %2313 = vmatmul.mubr.bf16.gmra.mrb[0].mxu0 %v1750
    %v2314 = vpop.f32.mrb[0].mxu0
    %v2315 = vadd.f32 %v2154, %v2314
    %v2316 = vpop.f32.mrb[0].mxu0
    %v2317 = vpop.f32.mrb[0].mxu0
    %v2318 = vadd.f32 %v2157, %v2317
    %v2319 = vpop.f32.mrb[0].mxu0
    %2320 = vmatprep.mubr.bf16.mxu0 %v1755
    %2321 = vmatmul.mubr.bf16.gmra.mrb[0].mxu0 %v1754
    %v2322 = vpop.f32.mrb[0].mxu0
    %v2323 = vadd.f32 %v2162, %v2322
    %v2324 = vpop.f32.mrb[0].mxu0
    %v2325 = vpop.f32.mrb[0].mxu0
    %v2326 = vadd.f32 %v2165, %v2325
    %v2327 = vpop.f32.mrb[0].mxu0
    %2328 = vmatprep.mubr.bf16.mxu0 %v1759
    %2329 = vmatmul.mubr.bf16.gmra.mrb[0].mxu0 %v1758
    %v2330 = vpop.f32.mrb[0].mxu0
    %v2331 = vadd.f32 %v2170, %v2330
    %v2332 = vpop.f32.mrb[0].mxu0
    %v2333 = vpop.f32.mrb[0].mxu0
    %v2334 = vadd.f32 %v2173, %v2333
    %v2335 = vpop.f32.mrb[0].mxu0
    %2336 = vmatprep.mubr.bf16.mxu0 %v1763
    %2337 = vmatmul.mubr.bf16.gmra.mrb[0].mxu0 %v1762
    %v2338 = vpop.f32.mrb[0].mxu0
    %v2339 = vadd.f32 %v2178, %v2338
    %v2340 = vpop.f32.mrb[0].mxu0
    %v2341 = vpop.f32.mrb[0].mxu0
    %v2342 = vadd.f32 %v2181, %v2341
    %v2343 = vpop.f32.mrb[0].mxu0
    %2344 = vmatprep.mubr.bf16.mxu0 %v1767
    %2345 = vmatmul.mubr.bf16.gmra.mrb[0].mxu0 %v1766
    %v2346 = vpop.f32.mrb[0].mxu0
    %v2347 = vadd.f32 %v2186, %v2346
    %v2348 = vpop.f32.mrb[0].mxu0
    %v2349 = vpop.f32.mrb[0].mxu0
    %v2350 = vadd.f32 %v2189, %v2349
    %v2351 = vpop.f32.mrb[0].mxu0
    %2352 = vdwg.mxu0
    %v2353 = vmax.f32 %v2227, 0.0
    %v2354 = vmax.f32 %v2230, 0.0
    %v2355 = vmax.f32 %v2235, 0.0
    %v2356 = vmax.f32 %v2238, 0.0
    %v2357 = vmax.f32 %v2243, 0.0
    %v2358 = vmax.f32 %v2246, 0.0
    %v2359 = vmax.f32 %v2251, 0.0
    %v2360 = vmax.f32 %v2254, 0.0
    %v2361 = vmax.f32 %v2259, 0.0
    %v2362 = vmax.f32 %v2262, 0.0
    %v2363 = vmax.f32 %v2267, 0.0
    %v2364 = vmax.f32 %v2270, 0.0
    %v2365 = vmax.f32 %v2275, 0.0
    %v2366 = vmax.f32 %v2278, 0.0
    %v2367 = vmax.f32 %v2283, 0.0
    %v2368 = vmax.f32 %v2286, 0.0
    %v2369 = vmax.f32 %v2291, 0.0
    %v2370 = vmax.f32 %v2294, 0.0
    %v2371 = vmax.f32 %v2299, 0.0
    %v2372 = vmax.f32 %v2302, 0.0
    %v2373 = vmax.f32 %v2307, 0.0
    %v2374 = vmax.f32 %v2310, 0.0
    %v2375 = vmax.f32 %v2315, 0.0
    %v2376 = vmax.f32 %v2318, 0.0
    %v2377 = vmax.f32 %v2323, 0.0
    %v2378 = vmax.f32 %v2326, 0.0
    %v2379 = vmax.f32 %v2331, 0.0
    %v2380 = vmax.f32 %v2334, 0.0
    %v2381 = vmax.f32 %v2339, 0.0
    %v2382 = vmax.f32 %v2342, 0.0
    %v2383 = vmax.f32 %v2347, 0.0
    %v2384 = vmax.f32 %v2350, 0.0
    %v2385 = vpack.c.bf16 %v2354, %v2353
    %v2386 = vpack.c.bf16 %v2356, %v2355
    %v2387 = vpack.c.bf16 %v2358, %v2357
    %v2388 = vpack.c.bf16 %v2360, %v2359
    %v2389 = vpack.c.bf16 %v2362, %v2361
    %v2390 = vpack.c.bf16 %v2364, %v2363
    %v2391 = vpack.c.bf16 %v2366, %v2365
    %v2392 = vpack.c.bf16 %v2368, %v2367
    %v2393 = vpack.c.bf16 %v2370, %v2369
    %v2394 = vpack.c.bf16 %v2372, %v2371
    %v2395 = vpack.c.bf16 %v2374, %v2373
    %v2396 = vpack.c.bf16 %v2376, %v2375
    %v2397 = vpack.c.bf16 %v2378, %v2377
    %v2398 = vpack.c.bf16 %v2380, %v2379
    %v2399 = vpack.c.bf16 %v2382, %v2381
    %v2400 = vpack.c.bf16 %v2384, %v2383
    %v2401 = vld [vmem:[#allocation2] sm:$0xf]
    %v2402 = vld [vmem:[#allocation2 + $0x4] sm:$0xf]
    %v2403 = vld [vmem:[#allocation2 + $0x8] sm:$0xf]
    %v2404 = vld [vmem:[#allocation2 + $0xc] sm:$0xf]
    %v2405 = vld [vmem:[#allocation2 + $0x10] sm:$0xf]
    %v2406 = vld [vmem:[#allocation2 + $0x14] sm:$0xf]
    %v2407 = vld [vmem:[#allocation2 + $0x18] sm:$0xf]
    %v2408 = vld [vmem:[#allocation2 + $0x1c] sm:$0xf]
    %v2409 = vld [vmem:[#allocation2 + $0x20] sm:$0xf]
    %v2410 = vld [vmem:[#allocation2 + $0x24] sm:$0xf]
    %v2411 = vld [vmem:[#allocation2 + $0x28] sm:$0xf]
    %v2412 = vld [vmem:[#allocation2 + $0x2c] sm:$0xf]
    %v2413 = vld [vmem:[#allocation2 + $0x30] sm:$0xf]
    %v2414 = vld [vmem:[#allocation2 + $0x34] sm:$0xf]
    %v2415 = vld [vmem:[#allocation2 + $0x38] sm:$0xf]
    %v2416 = vld [vmem:[#allocation2 + $0x3c] sm:$0xf]
    %v2417 = vld [vmem:[%s4] sm:$0x1]
    %v2419 = vlaneseq
    %v2420 = vshrl.u32 %v2419, 7
    %v2421 = vsub.s32 0, %v2420
    %v2422 = vrot.slane %v2417, %v2421
    %v2440 = vunpack.c.l.b16 %v2401
    %v2441 = vunpack.c.l.b16 %v2402
    %v2442 = vunpack.c.l.b16 %v2403
    %v2443 = vunpack.c.l.b16 %v2404
    %v2444 = vunpack.c.l.b16 %v2405
    %v2445 = vunpack.c.l.b16 %v2406
    %v2446 = vunpack.c.l.b16 %v2407
    %v2447 = vunpack.c.l.b16 %v2408
    %v2448 = vunpack.c.l.b16 %v2409
    %v2449 = vunpack.c.l.b16 %v2410
    %v2450 = vunpack.c.l.b16 %v2411
    %v2451 = vunpack.c.l.b16 %v2412
    %v2452 = vunpack.c.l.b16 %v2413
    %v2453 = vunpack.c.l.b16 %v2414
    %v2454 = vunpack.c.l.b16 %v2415
    %v2455 = vunpack.c.l.b16 %v2416
    %v2456 = vpack.c.b16 %v2441, %v2440
    %v2457 = vpack.c.b16 %v2443, %v2442
    %v2458 = vpack.c.b16 %v2445, %v2444
    %v2459 = vpack.c.b16 %v2447, %v2446
    %v2460 = vpack.c.b16 %v2449, %v2448
    %v2461 = vpack.c.b16 %v2451, %v2450
    %v2462 = vpack.c.b16 %v2453, %v2452
    %v2463 = vpack.c.b16 %v2455, %v2454
    %2472 = vmatprep.subr.bf16.mxu0 0
    %2473 = vmatpush1.bf16.msra.mxu0 %v2456
    %2474 = vmatprep.subr.bf16.mxu0 0
    %2475 = vmatpush1.bf16.msra.mxu0 %v2457
    %2476 = vmatprep.subr.bf16.mxu0 0
    %2477 = vmatpush1.bf16.msra.mxu0 %v2458
    %2478 = vmatprep.subr.bf16.mxu0 0
    %2479 = vmatpush1.bf16.msra.mxu0 %v2459
    %2480 = vmatprep.subr.bf16.mxu0 0
    %2481 = vmatpush1.bf16.msra.mxu0 %v2460
    %2482 = vmatprep.subr.bf16.mxu0 0
    %2483 = vmatpush1.bf16.msra.mxu0 %v2461
    %2484 = vmatprep.subr.bf16.mxu0 0
    %2485 = vmatpush1.bf16.msra.mxu0 %v2462
    %2486 = vmatprep.subr.bf16.mxu0 0
    %2487 = vmatpush1.bf16.msra.mxu0 %v2463
    %2488 = vmatprep.subr.bf16.mxu0 0
    %2489 = vmatpush1.bf16.msra.mxu0 0
    %2490 = vmatprep.subr.bf16.mxu0 0
    %2491 = vmatpush1.bf16.msra.mxu0 0
    %2492 = vmatprep.subr.bf16.mxu0 0
    %2493 = vmatpush1.bf16.msra.mxu0 0
    %2494 = vmatprep.subr.bf16.mxu0 0
    %2495 = vmatpush1.bf16.msra.mxu0 0
    %2496 = vmatprep.subr.bf16.mxu0 0
    %2497 = vmatpush1.bf16.msra.mxu0 0
    %2498 = vmatprep.subr.bf16.mxu0 0
    %2499 = vmatpush1.bf16.msra.mxu0 0
    %2500 = vmatprep.subr.bf16.mxu0 0
    %2501 = vmatpush1.bf16.msra.mxu0 0
    %2502 = vmatprep.subr.bf16.mxu0 0
    %2503 = vmatpush1.bf16.msra.mxu0 0
    %2504 = vmatprep.mubr.bf16.mxu0 0
    %2505 = vmatmul.mubr.bf16.gmra.mrb[0].mxu0 %v2385
    %v2506 = vpop.f32.mrb[0].mxu0
    %v2507 = vadd.f32 %v2422, %v2506
    %v2508 = vpop.f32.mrb[0].mxu0
    %v2509 = vpop.f32.mrb[0].mxu0
    %v2510 = vadd.f32 %v2422, %v2509
    %v2511 = vpop.f32.mrb[0].mxu0
    %2512 = vmatprep.mubr.bf16.mxu0 0
    %2513 = vmatmul.mubr.bf16.gmra.mrb[0].mxu0 %v2386
    %v2514 = vpop.f32.mrb[0].mxu0
    %v2515 = vadd.f32 %v2422, %v2514
    %v2516 = vpop.f32.mrb[0].mxu0
    %v2517 = vpop.f32.mrb[0].mxu0
    %v2518 = vadd.f32 %v2422, %v2517
    %v2519 = vpop.f32.mrb[0].mxu0
    %2520 = vmatprep.mubr.bf16.mxu0 0
    %2521 = vmatmul.mubr.bf16.gmra.mrb[0].mxu0 %v2387
    %v2522 = vpop.f32.mrb[0].mxu0
    %v2523 = vadd.f32 %v2422, %v2522
    %v2524 = vpop.f32.mrb[0].mxu0
    %v2525 = vpop.f32.mrb[0].mxu0
    %v2526 = vadd.f32 %v2422, %v2525
    %v2527 = vpop.f32.mrb[0].mxu0
    %2528 = vmatprep.mubr.bf16.mxu0 0
    %2529 = vmatmul.mubr.bf16.gmra.mrb[0].mxu0 %v2388
    %v2530 = vpop.f32.mrb[0].mxu0
    %v2531 = vadd.f32 %v2422, %v2530
    %v2532 = vpop.f32.mrb[0].mxu0
    %v2533 = vpop.f32.mrb[0].mxu0
    %v2534 = vadd.f32 %v2422, %v2533
    %v2535 = vpop.f32.mrb[0].mxu0
    %2536 = vmatprep.mubr.bf16.mxu0 0
    %2537 = vmatmul.mubr.bf16.gmra.mrb[0].mxu0 %v2389
    %v2538 = vpop.f32.mrb[0].mxu0
    %v2539 = vadd.f32 %v2422, %v2538
    %v2540 = vpop.f32.mrb[0].mxu0
    %v2541 = vpop.f32.mrb[0].mxu0
    %v2542 = vadd.f32 %v2422, %v2541
    %v2543 = vpop.f32.mrb[0].mxu0
    %2544 = vmatprep.mubr.bf16.mxu0 0
    %2545 = vmatmul.mubr.bf16.gmra.mrb[0].mxu0 %v2390
    %v2546 = vpop.f32.mrb[0].mxu0
    %v2547 = vadd.f32 %v2422, %v2546
    %v2548 = vpop.f32.mrb[0].mxu0
    %v2549 = vpop.f32.mrb[0].mxu0
    %v2550 = vadd.f32 %v2422, %v2549
    %v2551 = vpop.f32.mrb[0].mxu0
    %2552 = vmatprep.mubr.bf16.mxu0 0
    %2553 = vmatmul.mubr.bf16.gmra.mrb[0].mxu0 %v2391
    %v2554 = vpop.f32.mrb[0].mxu0
    %v2555 = vadd.f32 %v2422, %v2554
    %v2556 = vpop.f32.mrb[0].mxu0
    %v2557 = vpop.f32.mrb[0].mxu0
    %v2558 = vadd.f32 %v2422, %v2557
    %v2559 = vpop.f32.mrb[0].mxu0
    %2560 = vmatprep.mubr.bf16.mxu0 0
    %2561 = vmatmul.mubr.bf16.gmra.mrb[0].mxu0 %v2392
    %v2562 = vpop.f32.mrb[0].mxu0
    %v2563 = vadd.f32 %v2422, %v2562
    %v2564 = vpop.f32.mrb[0].mxu0
    %v2565 = vpop.f32.mrb[0].mxu0
    %v2566 = vadd.f32 %v2422, %v2565
    %v2567 = vpop.f32.mrb[0].mxu0
    %2568 = vmatprep.mubr.bf16.mxu0 0
    %2569 = vmatmul.mubr.bf16.gmra.mrb[0].mxu0 %v2393
    %v2570 = vpop.f32.mrb[0].mxu0
    %v2571 = vadd.f32 %v2422, %v2570
    %v2572 = vpop.f32.mrb[0].mxu0
    %v2573 = vpop.f32.mrb[0].mxu0
    %v2574 = vadd.f32 %v2422, %v2573
    %v2575 = vpop.f32.mrb[0].mxu0
    %2576 = vmatprep.mubr.bf16.mxu0 0
    %2577 = vmatmul.mubr.bf16.gmra.mrb[0].mxu0 %v2394
    %v2578 = vpop.f32.mrb[0].mxu0
    %v2579 = vadd.f32 %v2422, %v2578
    %v2580 = vpop.f32.mrb[0].mxu0
    %v2581 = vpop.f32.mrb[0].mxu0
    %v2582 = vadd.f32 %v2422, %v2581
    %v2583 = vpop.f32.mrb[0].mxu0
    %2584 = vmatprep.mubr.bf16.mxu0 0
    %2585 = vmatmul.mubr.bf16.gmra.mrb[0].mxu0 %v2395
    %v2586 = vpop.f32.mrb[0].mxu0
    %v2587 = vadd.f32 %v2422, %v2586
    %v2588 = vpop.f32.mrb[0].mxu0
    %v2589 = vpop.f32.mrb[0].mxu0
    %v2590 = vadd.f32 %v2422, %v2589
    %v2591 = vpop.f32.mrb[0].mxu0
    %2592 = vmatprep.mubr.bf16.mxu0 0
    %2593 = vmatmul.mubr.bf16.gmra.mrb[0].mxu0 %v2396
    %v2594 = vpop.f32.mrb[0].mxu0
    %v2595 = vadd.f32 %v2422, %v2594
    %v2596 = vpop.f32.mrb[0].mxu0
    %v2597 = vpop.f32.mrb[0].mxu0
    %v2598 = vadd.f32 %v2422, %v2597
    %v2599 = vpop.f32.mrb[0].mxu0
    %2600 = vmatprep.mubr.bf16.mxu0 0
    %2601 = vmatmul.mubr.bf16.gmra.mrb[0].mxu0 %v2397
    %v2602 = vpop.f32.mrb[0].mxu0
    %v2603 = vadd.f32 %v2422, %v2602
    %v2604 = vpop.f32.mrb[0].mxu0
    %v2605 = vpop.f32.mrb[0].mxu0
    %v2606 = vadd.f32 %v2422, %v2605
    %v2607 = vpop.f32.mrb[0].mxu0
    %2608 = vmatprep.mubr.bf16.mxu0 0
    %2609 = vmatmul.mubr.bf16.gmra.mrb[0].mxu0 %v2398
    %v2610 = vpop.f32.mrb[0].mxu0
    %v2611 = vadd.f32 %v2422, %v2610
    %v2612 = vpop.f32.mrb[0].mxu0
    %v2613 = vpop.f32.mrb[0].mxu0
    %v2614 = vadd.f32 %v2422, %v2613
    %v2615 = vpop.f32.mrb[0].mxu0
    %2616 = vmatprep.mubr.bf16.mxu0 0
    %2617 = vmatmul.mubr.bf16.gmra.mrb[0].mxu0 %v2399
    %v2618 = vpop.f32.mrb[0].mxu0
    %v2619 = vadd.f32 %v2422, %v2618
    %v2620 = vpop.f32.mrb[0].mxu0
    %v2621 = vpop.f32.mrb[0].mxu0
    %v2622 = vadd.f32 %v2422, %v2621
    %v2623 = vpop.f32.mrb[0].mxu0
    %2624 = vmatprep.mubr.bf16.mxu0 0
    %2625 = vmatmul.mubr.bf16.gmra.mrb[0].mxu0 %v2400
    %v2626 = vpop.f32.mrb[0].mxu0
    %v2627 = vadd.f32 %v2422, %v2626
    %v2628 = vpop.f32.mrb[0].mxu0
    %v2629 = vpop.f32.mrb[0].mxu0
    %v2630 = vadd.f32 %v2422, %v2629
    %v2631 = vpop.f32.mrb[0].mxu0
    %2632 = vdwg.mxu0
    %2633 = vmax.xlane.f32.xlu0 %v2507
    %v2634 = vpop.xlane.xlu0 %2633
    %2635 = vmax.xlane.f32.xlu0 %v2510
    %v2636 = vpop.xlane.xlu0 %2635
    %2637 = vmax.xlane.f32.xlu0 %v2515
    %v2638 = vpop.xlane.xlu0 %2637
    %2639 = vmax.xlane.f32.xlu0 %v2518
    %v2640 = vpop.xlane.xlu0 %2639
    %2641 = vmax.xlane.f32.xlu0 %v2523
    %v2642 = vpop.xlane.xlu0 %2641
    %2643 = vmax.xlane.f32.xlu0 %v2526
    %v2644 = vpop.xlane.xlu0 %2643
    %2645 = vmax.xlane.f32.xlu0 %v2531
    %v2646 = vpop.xlane.xlu0 %2645
    %2647 = vmax.xlane.f32.xlu0 %v2534
    %v2648 = vpop.xlane.xlu0 %2647
    %2649 = vmax.xlane.f32.xlu0 %v2539
    %v2650 = vpop.xlane.xlu0 %2649
    %2651 = vmax.xlane.f32.xlu0 %v2542
    %v2652 = vpop.xlane.xlu0 %2651
    %2653 = vmax.xlane.f32.xlu0 %v2547
    %v2654 = vpop.xlane.xlu0 %2653
    %2655 = vmax.xlane.f32.xlu0 %v2550
    %v2656 = vpop.xlane.xlu0 %2655
    %2657 = vmax.xlane.f32.xlu0 %v2555
    %v2658 = vpop.xlane.xlu0 %2657
    %2659 = vmax.xlane.f32.xlu0 %v2558
    %v2660 = vpop.xlane.xlu0 %2659
    %2661 = vmax.xlane.f32.xlu0 %v2563
    %v2662 = vpop.xlane.xlu0 %2661
    %2663 = vmax.xlane.f32.xlu0 %v2566
    %v2664 = vpop.xlane.xlu0 %2663
    %2665 = vmax.xlane.f32.xlu0 %v2571
    %v2666 = vpop.xlane.xlu0 %2665
    %2667 = vmax.xlane.f32.xlu0 %v2574
    %v2668 = vpop.xlane.xlu0 %2667
    %2669 = vmax.xlane.f32.xlu0 %v2579
    %v2670 = vpop.xlane.xlu0 %2669
    %2671 = vmax.xlane.f32.xlu0 %v2582
    %v2672 = vpop.xlane.xlu0 %2671
    %2673 = vmax.xlane.f32.xlu0 %v2587
    %v2674 = vpop.xlane.xlu0 %2673
    %2675 = vmax.xlane.f32.xlu0 %v2590
    %v2676 = vpop.xlane.xlu0 %2675
    %2677 = vmax.xlane.f32.xlu0 %v2595
    %v2678 = vpop.xlane.xlu0 %2677
    %2679 = vmax.xlane.f32.xlu0 %v2598
    %v2680 = vpop.xlane.xlu0 %2679
    %2681 = vmax.xlane.f32.xlu0 %v2603
    %v2682 = vpop.xlane.xlu0 %2681
    %2683 = vmax.xlane.f32.xlu0 %v2606
    %v2684 = vpop.xlane.xlu0 %2683
    %2685 = vmax.xlane.f32.xlu0 %v2611
    %v2686 = vpop.xlane.xlu0 %2685
    %2687 = vmax.xlane.f32.xlu0 %v2614
    %v2688 = vpop.xlane.xlu0 %2687
    %2689 = vmax.xlane.f32.xlu0 %v2619
    %v2690 = vpop.xlane.xlu0 %2689
    %2691 = vmax.xlane.f32.xlu0 %v2622
    %v2692 = vpop.xlane.xlu0 %2691
    %2693 = vmax.xlane.f32.xlu0 %v2627
    %v2694 = vpop.xlane.xlu0 %2693
    %2695 = vmax.xlane.f32.xlu0 %v2630
    %v2696 = vpop.xlane.xlu0 %2695
    %v2697 = vsub.f32 %v2507, %v2634
    %v2698 = vsub.f32 %v2510, %v2636
    %v2699 = vsub.f32 %v2515, %v2638
    %v2700 = vsub.f32 %v2518, %v2640
    %v2701 = vsub.f32 %v2523, %v2642
    %v2702 = vsub.f32 %v2526, %v2644
    %v2703 = vsub.f32 %v2531, %v2646
    %v2704 = vsub.f32 %v2534, %v2648
    %v2705 = vsub.f32 %v2539, %v2650
    %v2706 = vsub.f32 %v2542, %v2652
    %v2707 = vsub.f32 %v2547, %v2654
    %v2708 = vsub.f32 %v2550, %v2656
    %v2709 = vsub.f32 %v2555, %v2658
    %v2710 = vsub.f32 %v2558, %v2660
    %v2711 = vsub.f32 %v2563, %v2662
    %v2712 = vsub.f32 %v2566, %v2664
    %v2713 = vsub.f32 %v2571, %v2666
    %v2714 = vsub.f32 %v2574, %v2668
    %v2715 = vsub.f32 %v2579, %v2670
    %v2716 = vsub.f32 %v2582, %v2672
    %v2717 = vsub.f32 %v2587, %v2674
    %v2718 = vsub.f32 %v2590, %v2676
    %v2719 = vsub.f32 %v2595, %v2678
    %v2720 = vsub.f32 %v2598, %v2680
    %v2721 = vsub.f32 %v2603, %v2682
    %v2722 = vsub.f32 %v2606, %v2684
    %v2723 = vsub.f32 %v2611, %v2686
    %v2724 = vsub.f32 %v2614, %v2688
    %v2725 = vsub.f32 %v2619, %v2690
    %v2726 = vsub.f32 %v2622, %v2692
    %v2727 = vsub.f32 %v2627, %v2694
    %v2728 = vsub.f32 %v2630, %v2696
    %v2729 = vmul.f32 %v2697, 1.442695
    %v2730 = vpow.pop %v2729
    %v2731 = vmul.f32 %v2698, 1.442695
    %v2732 = vpow.pop %v2731
    %v2733 = vmul.f32 %v2699, 1.442695
    %v2734 = vpow.pop %v2733
    %v2735 = vmul.f32 %v2700, 1.442695
    %v2736 = vpow.pop %v2735
    %v2737 = vmul.f32 %v2701, 1.442695
    %v2738 = vpow.pop %v2737
    %v2739 = vmul.f32 %v2702, 1.442695
    %v2740 = vpow.pop %v2739
    %v2741 = vmul.f32 %v2703, 1.442695
    %v2742 = vpow.pop %v2741
    %v2743 = vmul.f32 %v2704, 1.442695
    %v2744 = vpow.pop %v2743
    %v2745 = vmul.f32 %v2705, 1.442695
    %v2746 = vpow.pop %v2745
    %v2747 = vmul.f32 %v2706, 1.442695
    %v2748 = vpow.pop %v2747
    %v2749 = vmul.f32 %v2707, 1.442695
    %v2750 = vpow.pop %v2749
    %v2751 = vmul.f32 %v2708, 1.442695
    %v2752 = vpow.pop %v2751
    %v2753 = vmul.f32 %v2709, 1.442695
    %v2754 = vpow.pop %v2753
    %v2755 = vmul.f32 %v2710, 1.442695
    %v2756 = vpow.pop %v2755
    %v2757 = vmul.f32 %v2711, 1.442695
    %v2758 = vpow.pop %v2757
    %v2759 = vmul.f32 %v2712, 1.442695
    %v2760 = vpow.pop %v2759
    %v2761 = vmul.f32 %v2713, 1.442695
    %v2762 = vpow.pop %v2761
    %v2763 = vmul.f32 %v2714, 1.442695
    %v2764 = vpow.pop %v2763
    %v2765 = vmul.f32 %v2715, 1.442695
    %v2766 = vpow.pop %v2765
    %v2767 = vmul.f32 %v2716, 1.442695
    %v2768 = vpow.pop %v2767
    %v2769 = vmul.f32 %v2717, 1.442695
    %v2770 = vpow.pop %v2769
    %v2771 = vmul.f32 %v2718, 1.442695
    %v2772 = vpow.pop %v2771
    %v2773 = vmul.f32 %v2719, 1.442695
    %v2774 = vpow.pop %v2773
    %v2775 = vmul.f32 %v2720, 1.442695
    %v2776 = vpow.pop %v2775
    %v2777 = vmul.f32 %v2721, 1.442695
    %v2778 = vpow.pop %v2777
    %v2779 = vmul.f32 %v2722, 1.442695
    %v2780 = vpow.pop %v2779
    %v2781 = vmul.f32 %v2723, 1.442695
    %v2782 = vpow.pop %v2781
    %v2783 = vmul.f32 %v2724, 1.442695
    %v2784 = vpow.pop %v2783
    %v2785 = vmul.f32 %v2725, 1.442695
    %v2786 = vpow.pop %v2785
    %v2787 = vmul.f32 %v2726, 1.442695
    %v2788 = vpow.pop %v2787
    %v2789 = vmul.f32 %v2727, 1.442695
    %v2790 = vpow.pop %v2789
    %v2791 = vmul.f32 %v2728, 1.442695
    %v2792 = vpow.pop %v2791
    %2793 = vadd.xlane.f32.xlu0 %v2730
    %v2794 = vpop.xlane.xlu0 %2793
    %2795 = vadd.xlane.f32.xlu0 %v2732
    %v2796 = vpop.xlane.xlu0 %2795
    %2797 = vadd.xlane.f32.xlu0 %v2734
    %v2798 = vpop.xlane.xlu0 %2797
    %2799 = vadd.xlane.f32.xlu0 %v2736
    %v2800 = vpop.xlane.xlu0 %2799
    %2801 = vadd.xlane.f32.xlu0 %v2738
    %v2802 = vpop.xlane.xlu0 %2801
    %2803 = vadd.xlane.f32.xlu0 %v2740
    %v2804 = vpop.xlane.xlu0 %2803
    %2805 = vadd.xlane.f32.xlu0 %v2742
    %v2806 = vpop.xlane.xlu0 %2805
    %2807 = vadd.xlane.f32.xlu0 %v2744
    %v2808 = vpop.xlane.xlu0 %2807
    %2809 = vadd.xlane.f32.xlu0 %v2746
    %v2810 = vpop.xlane.xlu0 %2809
    %2811 = vadd.xlane.f32.xlu0 %v2748
    %v2812 = vpop.xlane.xlu0 %2811
    %2813 = vadd.xlane.f32.xlu0 %v2750
    %v2814 = vpop.xlane.xlu0 %2813
    %2815 = vadd.xlane.f32.xlu0 %v2752
    %v2816 = vpop.xlane.xlu0 %2815
    %2817 = vadd.xlane.f32.xlu0 %v2754
    %v2818 = vpop.xlane.xlu0 %2817
    %2819 = vadd.xlane.f32.xlu0 %v2756
    %v2820 = vpop.xlane.xlu0 %2819
    %2821 = vadd.xlane.f32.xlu0 %v2758
    %v2822 = vpop.xlane.xlu0 %2821
    %2823 = vadd.xlane.f32.xlu0 %v2760
    %v2824 = vpop.xlane.xlu0 %2823
    %2825 = vadd.xlane.f32.xlu0 %v2762
    %v2826 = vpop.xlane.xlu0 %2825
    %2827 = vadd.xlane.f32.xlu0 %v2764
    %v2828 = vpop.xlane.xlu0 %2827
    %2829 = vadd.xlane.f32.xlu0 %v2766
    %v2830 = vpop.xlane.xlu0 %2829
    %2831 = vadd.xlane.f32.xlu0 %v2768
    %v2832 = vpop.xlane.xlu0 %2831
    %2833 = vadd.xlane.f32.xlu0 %v2770
    %v2834 = vpop.xlane.xlu0 %2833
    %2835 = vadd.xlane.f32.xlu0 %v2772
    %v2836 = vpop.xlane.xlu0 %2835
    %2837 = vadd.xlane.f32.xlu0 %v2774
    %v2838 = vpop.xlane.xlu0 %2837
    %2839 = vadd.xlane.f32.xlu0 %v2776
    %v2840 = vpop.xlane.xlu0 %2839
    %2841 = vadd.xlane.f32.xlu0 %v2778
    %v2842 = vpop.xlane.xlu0 %2841
    %2843 = vadd.xlane.f32.xlu0 %v2780
    %v2844 = vpop.xlane.xlu0 %2843
    %2845 = vadd.xlane.f32.xlu0 %v2782
    %v2846 = vpop.xlane.xlu0 %2845
    %2847 = vadd.xlane.f32.xlu0 %v2784
    %v2848 = vpop.xlane.xlu0 %2847
    %2849 = vadd.xlane.f32.xlu0 %v2786
    %v2850 = vpop.xlane.xlu0 %2849
    %2851 = vadd.xlane.f32.xlu0 %v2788
    %v2852 = vpop.xlane.xlu0 %2851
    %2853 = vadd.xlane.f32.xlu0 %v2790
    %v2854 = vpop.xlane.xlu0 %2853
    %2855 = vadd.xlane.f32.xlu0 %v2792
    %v2856 = vpop.xlane.xlu0 %2855
    %v2857 = vlog2.pop %v2794
    %v2858 = vmul.f32 %v2857, 0.6931472
    %v2859 = vlog2.pop %v2796
    %v2860 = vmul.f32 %v2859, 0.6931472
    %v2861 = vlog2.pop %v2798
    %v2862 = vmul.f32 %v2861, 0.6931472
    %v2863 = vlog2.pop %v2800
    %v2864 = vmul.f32 %v2863, 0.6931472
    %v2865 = vlog2.pop %v2802
    %v2866 = vmul.f32 %v2865, 0.6931472
    %v2867 = vlog2.pop %v2804
    %v2868 = vmul.f32 %v2867, 0.6931472
    %v2869 = vlog2.pop %v2806
    %v2870 = vmul.f32 %v2869, 0.6931472
    %v2871 = vlog2.pop %v2808
    %v2872 = vmul.f32 %v2871, 0.6931472
    %v2873 = vlog2.pop %v2810
    %v2874 = vmul.f32 %v2873, 0.6931472
    %v2875 = vlog2.pop %v2812
    %v2876 = vmul.f32 %v2875, 0.6931472
    %v2877 = vlog2.pop %v2814
    %v2878 = vmul.f32 %v2877, 0.6931472
    %v2879 = vlog2.pop %v2816
    %v2880 = vmul.f32 %v2879, 0.6931472
    %v2881 = vlog2.pop %v2818
    %v2882 = vmul.f32 %v2881, 0.6931472
    %v2883 = vlog2.pop %v2820
    %v2884 = vmul.f32 %v2883, 0.6931472
    %v2885 = vlog2.pop %v2822
    %v2886 = vmul.f32 %v2885, 0.6931472
    %v2887 = vlog2.pop %v2824
    %v2888 = vmul.f32 %v2887, 0.6931472
    %v2889 = vlog2.pop %v2826
    %v2890 = vmul.f32 %v2889, 0.6931472
    %v2891 = vlog2.pop %v2828
    %v2892 = vmul.f32 %v2891, 0.6931472
    %v2893 = vlog2.pop %v2830
    %v2894 = vmul.f32 %v2893, 0.6931472
    %v2895 = vlog2.pop %v2832
    %v2896 = vmul.f32 %v2895, 0.6931472
    %v2897 = vlog2.pop %v2834
    %v2898 = vmul.f32 %v2897, 0.6931472
    %v2899 = vlog2.pop %v2836
    %v2900 = vmul.f32 %v2899, 0.6931472
    %v2901 = vlog2.pop %v2838
    %v2902 = vmul.f32 %v2901, 0.6931472
    %v2903 = vlog2.pop %v2840
    %v2904 = vmul.f32 %v2903, 0.6931472
    %v2905 = vlog2.pop %v2842
    %v2906 = vmul.f32 %v2905, 0.6931472
    %v2907 = vlog2.pop %v2844
    %v2908 = vmul.f32 %v2907, 0.6931472
    %v2909 = vlog2.pop %v2846
    %v2910 = vmul.f32 %v2909, 0.6931472
    %v2911 = vlog2.pop %v2848
    %v2912 = vmul.f32 %v2911, 0.6931472
    %v2913 = vlog2.pop %v2850
    %v2914 = vmul.f32 %v2913, 0.6931472
    %v2915 = vlog2.pop %v2852
    %v2916 = vmul.f32 %v2915, 0.6931472
    %v2917 = vlog2.pop %v2854
    %v2918 = vmul.f32 %v2917, 0.6931472
    %v2919 = vlog2.pop %v2856
    %v2920 = vmul.f32 %v2919, 0.6931472
    %v2921 = vsub.f32 %v2697, %v2858
    %v2922 = vsub.f32 %v2698, %v2860
    %v2923 = vsub.f32 %v2699, %v2862
    %v2924 = vsub.f32 %v2700, %v2864
    %v2925 = vsub.f32 %v2701, %v2866
    %v2926 = vsub.f32 %v2702, %v2868
    %v2927 = vsub.f32 %v2703, %v2870
    %v2928 = vsub.f32 %v2704, %v2872
    %v2929 = vsub.f32 %v2705, %v2874
    %v2930 = vsub.f32 %v2706, %v2876
    %v2931 = vsub.f32 %v2707, %v2878
    %v2932 = vsub.f32 %v2708, %v2880
    %v2933 = vsub.f32 %v2709, %v2882
    %v2934 = vsub.f32 %v2710, %v2884
    %v2935 = vsub.f32 %v2711, %v2886
    %v2936 = vsub.f32 %v2712, %v2888
    %v2937 = vsub.f32 %v2713, %v2890
    %v2938 = vsub.f32 %v2714, %v2892
    %v2939 = vsub.f32 %v2715, %v2894
    %v2940 = vsub.f32 %v2716, %v2896
    %v2941 = vsub.f32 %v2717, %v2898
    %v2942 = vsub.f32 %v2718, %v2900
    %v2943 = vsub.f32 %v2719, %v2902
    %v2944 = vsub.f32 %v2720, %v2904
    %v2945 = vsub.f32 %v2721, %v2906
    %v2946 = vsub.f32 %v2722, %v2908
    %v2947 = vsub.f32 %v2723, %v2910
    %v2948 = vsub.f32 %v2724, %v2912
    %v2949 = vsub.f32 %v2725, %v2914
    %v2950 = vsub.f32 %v2726, %v2916
    %v2951 = vsub.f32 %v2727, %v2918
    %v2952 = vsub.f32 %v2728, %v2920
    %2953 = vst [vmem:[%s5] sm:$0xff] %v2921
    %2954 = vst [vmem:[%s5 + $0x8] sm:$0xff] %v2922
    %2955 = vst [vmem:[%s5 + $0x10] sm:$0xff] %v2923
    %2956 = vst [vmem:[%s5 + $0x18] sm:$0xff] %v2924
    %2957 = vst [vmem:[%s5 + $0x20] sm:$0xff] %v2925
    %2958 = vst [vmem:[%s5 + $0x28] sm:$0xff] %v2926
    %2959 = vst [vmem:[%s5 + $0x30] sm:$0xff] %v2927
    %2960 = vst [vmem:[%s5 + $0x38] sm:$0xff] %v2928
    %2961 = vst [vmem:[%s5 + $0x40] sm:$0xff] %v2929
    %2962 = vst [vmem:[%s5 + $0x48] sm:$0xff] %v2930
    %2963 = vst [vmem:[%s5 + $0x50] sm:$0xff] %v2931
    %2964 = vst [vmem:[%s5 + $0x58] sm:$0xff] %v2932
    %2965 = vst [vmem:[%s5 + $0x60] sm:$0xff] %v2933
    %2966 = vst [vmem:[%s5 + $0x68] sm:$0xff] %v2934
    %2967 = vst [vmem:[%s5 + $0x70] sm:$0xff] %v2935
    %2968 = vst [vmem:[%s5 + $0x78] sm:$0xff] %v2936
    %2969 = vst [vmem:[%s5 + $0x80] sm:$0xff] %v2937
    %2970 = vst [vmem:[%s5 + $0x88] sm:$0xff] %v2938
    %2971 = vst [vmem:[%s5 + $0x90] sm:$0xff] %v2939
    %2972 = vst [vmem:[%s5 + $0x98] sm:$0xff] %v2940
    %2973 = vst [vmem:[%s5 + $0xa0] sm:$0xff] %v2941
    %2974 = vst [vmem:[%s5 + $0xa8] sm:$0xff] %v2942
    %2975 = vst [vmem:[%s5 + $0xb0] sm:$0xff] %v2943
    %2976 = vst [vmem:[%s5 + $0xb8] sm:$0xff] %v2944
    %2977 = vst [vmem:[%s5 + $0xc0] sm:$0xff] %v2945
    %2978 = vst [vmem:[%s5 + $0xc8] sm:$0xff] %v2946
    %2979 = vst [vmem:[%s5 + $0xd0] sm:$0xff] %v2947
    %2980 = vst [vmem:[%s5 + $0xd8] sm:$0xff] %v2948
    %2981 = vst [vmem:[%s5 + $0xe0] sm:$0xff] %v2949
    %2982 = vst [vmem:[%s5 + $0xe8] sm:$0xff] %v2950
    %2983 = vst [vmem:[%s5 + $0xf0] sm:$0xff] %v2951
    %2984 = vst [vmem:[%s5 + $0xf8] sm:$0xff] %v2952
    // Predicated region
    $region26: #{forward.1} parent=1 // pred_check
      _
    $region27: #{forward.1} parent=1 // pred_check_branch
      %2986 = sbr.rel (0) target = $region29
    $region28: #{forward.1} parent=1 // pred_region
      _
    $region29: #{forward.1} parent=1 // pred_fallthru
      _
    // Predicated region
    $region30: #{forward.1} parent=1 // pred_check
      _
    $region31: #{forward.1} parent=1 // pred_check_branch
      %2988 = sbr.rel (0) target = $region33
    $region32: #{forward.1} parent=1 // pred_region
      _
    $region33: #{forward.1} parent=1 // pred_fallthru
      _
    %2989 = vsyncpa [#allocation3], 1

</llo_original>
